<compile_context>
chip_gen: v5e
topology: v5e:2x2
jax: 0.10.0
libtpu: 0.0.40
codegen_flags: <defaults>
</compile_context>

<pallas_src>
import functools

import jax
import jax.numpy as jnp
from jax.experimental import pallas as pl
from jax.experimental.pallas import tpu as pltpu

LANE = 128
IN_DIM = 784
OUT_DIM = 10
OUT_PAD = 128          # lane-dense padded output width
NEG_LARGE = -1e30      # masks padded output columns out of the log_softmax


def _round_up(v, m):
    return (v + m - 1) // m * m


# ---------------------------------------------------------------------------
# Fused kernel: one batch tile, all layers.
# refs = (x_ref, w0, b0, w1, b1, ..., w_out, b_out, o_ref)
# ---------------------------------------------------------------------------
def _fused_mlp_kernel(*refs):
    x_ref = refs[0]
    o_ref = refs[-1]
    wb = refs[1:-1]
    n_layers = len(wb) // 2                     # hidden layers + output layer

    h = x_ref[...]                              # bf16 (TILE_B, 784)
    for li in range(n_layers - 1):              # hidden Linear + ReLU layers
        w = wb[2 * li][...]                     # bf16 (K, N_pad)
        b = wb[2 * li + 1][...]                 # f32  (1, N_pad)
        z = jnp.dot(h, w, preferred_element_type=jnp.float32) + b
        h = jnp.maximum(z, 0.0).astype(jnp.bfloat16)

    # output Linear + numerically-stable log_softmax (padded cols hold -1e30)
    z = jnp.dot(h, wb[-2][...], preferred_element_type=jnp.float32) + wb[-1][...]
    m = jnp.max(z, axis=-1, keepdims=True)
    shifted = z - m
    lse = jnp.log(jnp.sum(jnp.exp(shifted), axis=-1, keepdims=True))
    o_ref[...] = shifted - lse                  # lane-dense (TILE_B, 128) store


# ---------------------------------------------------------------------------
# Parameter init (PyTorch Linear-style) and layout preparation
# ---------------------------------------------------------------------------
def init_params(key, layers, neurons, input_dim=IN_DIM, out_dim=OUT_DIM):
    params = []
    in_dim = input_dim
    for _ in range(layers):
        key, kw, kb = jax.random.split(key, 3)
        bound = 1.0 / jnp.sqrt(in_dim)
        w = jax.random.uniform(kw, (in_dim, neurons), jnp.float32, -bound, bound)
        b = jax.random.uniform(kb, (neurons,), jnp.float32, -bound, bound)
        params.append((w, b))
        in_dim = neurons
    key, kw, kb = jax.random.split(key, 3)
    bound = 1.0 / jnp.sqrt(in_dim)
    w_out = jax.random.uniform(kw, (in_dim, out_dim), jnp.float32, -bound, bound)
    b_out = jax.random.uniform(kb, (out_dim,), jnp.float32, -bound, bound)
    return params, (w_out, b_out)


def prepare_params(params, out_params):
    """Pad weights to (K, N_pad) with N_pad a multiple of 128; cast to bf16.

    Layer 0 keeps K = 784 un-padded (x BlockSpec uses the full 784 dim, so no
    zero bytes are streamed; Mosaic pads lanes internally in VMEM).  Hidden
    layers: zero-padded rows/cols (padded channels stay exactly 0 after ReLU).
    Output layer: padded to 128 cols, padded bias = -1e30 so those logits
    vanish in the log_softmax.  Biases stay f32 with shape (1, N_pad).
    """
    prepared = []
    in_dim = IN_DIM                              # layer-0 contraction stays 784
    for w, b in params:
        k, n = w.shape
        n_pad = _round_up(n, LANE)
        w_p = jnp.zeros((in_dim, n_pad), jnp.float32).at[:k, :n].set(w)
        b_p = jnp.zeros((1, n_pad), jnp.float32).at[0, :n].set(b)
        prepared.append((w_p.astype(jnp.bfloat16), b_p))
        in_dim = n_pad
    w_out, b_out = out_params
    k, n = w_out.shape
    w_p = jnp.zeros((in_dim, OUT_PAD), jnp.float32).at[:k, :n].set(w_out)
    b_p = jnp.full((1, OUT_PAD), NEG_LARGE, jnp.float32).at[0, :n].set(b_out)
    prepared.append((w_p.astype(jnp.bfloat16), b_p))
    return prepared


# ---------------------------------------------------------------------------
# Tiling / VMEM sizing heuristics
# ---------------------------------------------------------------------------
def _pick_tile_b(batch):
    if batch >= 512:
        return 256                      # fills 256-wide MXU M dim, >=2 steps
    if batch >= 256:
        return 128                      # guarantees >=2 grid steps (v7x 2 TCs)
    return _round_up(max(batch, 1), 16)  # bf16 packs 16 rows per sublane group


def _estimate_vmem_bytes(tile_b, prepared, single_buffer_weights):
    w_bufs = 1 if single_buffer_weights else 2
    total = 2 * tile_b * IN_DIM * 2              # x tile, double-buffered bf16
    total += 2 * tile_b * OUT_PAD * 4            # out tile, double-buffered f32
    max_n = OUT_PAD
    for w, _ in prepared:
        k, n = w.shape
        total += w_bufs * (k * n * 2 + n * 4)    # bf16 weight + f32 bias
        max_n = max(max_n, n)
    total += 4 * tile_b * max_n * 4              # in-kernel f32 temporaries
    return total


# ---------------------------------------------------------------------------
# Forward pass: single fused pallas_call, batch grid
# ---------------------------------------------------------------------------
@functools.partial(jax.jit, static_argnums=(2,))
def _mlp_forward_impl(x, prepared, single_buffer_weights):
    h = x.reshape(-1, IN_DIM).astype(jnp.bfloat16)   # x.view(-1, 784) in bf16
    B = h.shape[0]
    tile_b = _pick_tile_b(B)
    B_pad = _round_up(B, tile_b)
    if B_pad != B:                                   # only pad when needed
        h = jnp.pad(h, ((0, B_pad - B), (0, 0)))

    const_map = lambda i: (0, 0)                     # VMEM-resident params
    flat_inputs = [h]
    in_specs = [pl.BlockSpec((tile_b, IN_DIM), lambda i: (i, 0))]
    for w, b in prepared:
        k, n = w.shape
        flat_inputs += [w, b]
        if single_buffer_weights:
            in_specs += [
                pl.BlockSpec((k, n), const_map, pipeline_mode=pl.Buffered(1)),
                pl.BlockSpec((1, n), const_map, pipeline_mode=pl.Buffered(1)),
            ]
        else:
            in_specs += [pl.BlockSpec((k, n), const_map),
                         pl.BlockSpec((1, n), const_map)]

    vmem_limit = int(min(max(
        _estimate_vmem_bytes(tile_b, prepared, single_buffer_weights) + (8 << 20),
        32 << 20), 64 << 20))

    out = pl.pallas_call(
        _fused_mlp_kernel,
        out_shape=jax.ShapeDtypeStruct((B_pad, OUT_PAD), jnp.float32),
        grid=(B_pad // tile_b,),
        in_specs=in_specs,
        out_specs=pl.BlockSpec((tile_b, OUT_PAD), lambda i: (i, 0)),
        compiler_params=pltpu.CompilerParams(
            dimension_semantics=("parallel",),       # 2-TC sharding on v7x
            vmem_limit_bytes=vmem_limit,
        ),
    )(*flat_inputs)

    return out[:B, :OUT_DIM]


def mlp_forward(x, prepared):
    # Prefer single-buffered VMEM-resident weights (halves their footprint);
    # fall back to default pipelining if pipeline_mode=pl.Buffered(1) is not
    # accepted by this JAX build.
    try:
        return _mlp_forward_impl(x, prepared, True)
    except Exception:
        return _mlp_forward_impl(x, prepared, False)


if __name__ == "__main__":
    key = jax.random.PRNGKey(0)
    k_x, k_p = jax.random.split(key)

    layers, neurons = 2, 128
    batch = 8

    # MNIST-like input; also exercises the .view(-1, 784) reshape.
    x = jax.random.normal(k_x, (batch, 1, 28, 28), jnp.float32)

    params, out_params = init_params(k_p, layers, neurons)
    prepared = prepare_params(params, out_params)

    y = mlp_forward(x, prepared)
    y = jax.block_until_ready(y)

    assert y.shape == (batch, 10), y.shape
    # log_softmax rows sum to 1 in probability space
    assert jnp.allclose(jnp.sum(jnp.exp(y), axis=1), 1.0, atol=1e-4)

    # Pure-JAX f32 reference (kernel matmuls are bf16 -> relaxed tolerance).
    h_ref = x.reshape(-1, IN_DIM)
    for w, b in params:
        h_ref = jnp.maximum(h_ref @ w + b, 0.0)
    w_out, b_out = out_params
    ref = jax.nn.log_softmax(h_ref @ w_out + b_out, axis=1)
    assert jnp.allclose(y, ref, atol=1e-1), float(jnp.max(jnp.abs(y - ref)))

    print("KERNEL_OK")
</pallas_src>

<mosaic_0001>
module attributes {stable_mosaic.version = 11 : i64} {
  func.func @_fused_mlp_kernel(%arg0: i32, %arg1: memref<16x784xbf16, #tpu.memory_space<vmem>>, %arg2: memref<784x128xbf16, #tpu.memory_space<vmem>>, %arg3: memref<1x128xf32, #tpu.memory_space<vmem>>, %arg4: memref<128x128xbf16, #tpu.memory_space<vmem>>, %arg5: memref<1x128xf32, #tpu.memory_space<vmem>>, %arg6: memref<128x128xbf16, #tpu.memory_space<vmem>>, %arg7: memref<1x128xf32, #tpu.memory_space<vmem>>, %arg8: memref<16x128xf32, #tpu.memory_space<vmem>>) attributes {dimension_semantics = [#tpu.dimension_semantics<parallel>], iteration_bounds = array<i64: 1>, scalar_prefetch = 0 : i64, scratch_operands = 0 : i64, tpu.core_type = #tpu.core_type<tc>, window_params = [{transform_indices = @transform_0, window_bounds = array<i64: 16, 784>}, {pipeline_mode = #tpu.pipeline_mode<synchronous>, transform_indices = @transform_1, window_bounds = array<i64: 784, 128>}, {pipeline_mode = #tpu.pipeline_mode<synchronous>, transform_indices = @transform_2, window_bounds = array<i64: 1, 128>}, {pipeline_mode = #tpu.pipeline_mode<synchronous>, transform_indices = @transform_3, window_bounds = array<i64: 128, 128>}, {pipeline_mode = #tpu.pipeline_mode<synchronous>, transform_indices = @transform_4, window_bounds = array<i64: 1, 128>}, {pipeline_mode = #tpu.pipeline_mode<synchronous>, transform_indices = @transform_5, window_bounds = array<i64: 128, 128>}, {pipeline_mode = #tpu.pipeline_mode<synchronous>, transform_indices = @transform_6, window_bounds = array<i64: 1, 128>}, {transform_indices = @transform_7, window_bounds = array<i64: 16, 128>}]} {
    %c0 = arith.constant 0 : index
    %c0_0 = arith.constant 0 : index
    %0 = vector.load %arg1[%c0, %c0_0] : memref<16x784xbf16, #tpu.memory_space<vmem>>, vector<16x784xbf16>
    %c0_1 = arith.constant 0 : index
    %c0_2 = arith.constant 0 : index
    %1 = vector.load %arg2[%c0_1, %c0_2] : memref<784x128xbf16, #tpu.memory_space<vmem>>, vector<784x128xbf16>
    %c0_3 = arith.constant 0 : index
    %c0_4 = arith.constant 0 : index
    %2 = vector.load %arg3[%c0_3, %c0_4] : memref<1x128xf32, #tpu.memory_space<vmem>>, vector<1x128xf32>
    %cst = arith.constant dense<0.000000e+00> : vector<16x128xf32>
    %3 = tpu.matmul %0, %1, %cst {dimension_numbers = #tpu.dot_dimension_numbers<[1], [0], [0], [1], [0, 0, 1, 1], [], []>} : vector<16x784xbf16>, vector<784x128xbf16>, vector<16x128xf32> -> vector<16x128xf32>
    %4 = vector.broadcast %2 : vector<1x128xf32> to vector<16x128xf32>
    %5 = arith.addf %3, %4 : vector<16x128xf32>
    %cst_5 = arith.constant 0.000000e+00 : f32
    %6 = vector.broadcast %cst_5 : f32 to vector<16x128xf32>
    %7 = arith.maximumf %5, %6 : vector<16x128xf32>
    %8 = arith.truncf %7 : vector<16x128xf32> to vector<16x128xbf16>
    %c0_6 = arith.constant 0 : index
    %c0_7 = arith.constant 0 : index
    %9 = vector.load %arg4[%c0_6, %c0_7] : memref<128x128xbf16, #tpu.memory_space<vmem>>, vector<128x128xbf16>
    %c0_8 = arith.constant 0 : index
    %c0_9 = arith.constant 0 : index
    %10 = vector.load %arg5[%c0_8, %c0_9] : memref<1x128xf32, #tpu.memory_space<vmem>>, vector<1x128xf32>
    %cst_10 = arith.constant dense<0.000000e+00> : vector<16x128xf32>
    %11 = tpu.matmul %8, %9, %cst_10 {dimension_numbers = #tpu.dot_dimension_numbers<[1], [0], [0], [1], [0, 0, 1, 1], [], []>} : vector<16x128xbf16>, vector<128x128xbf16>, vector<16x128xf32> -> vector<16x128xf32>
    %12 = vector.broadcast %10 : vector<1x128xf32> to vector<16x128xf32>
    %13 = arith.addf %11, %12 : vector<16x128xf32>
    %cst_11 = arith.constant 0.000000e+00 : f32
    %14 = vector.broadcast %cst_11 : f32 to vector<16x128xf32>
    %15 = arith.maximumf %13, %14 : vector<16x128xf32>
    %16 = arith.truncf %15 : vector<16x128xf32> to vector<16x128xbf16>
    %c0_12 = arith.constant 0 : index
    %c0_13 = arith.constant 0 : index
    %17 = vector.load %arg6[%c0_12, %c0_13] : memref<128x128xbf16, #tpu.memory_space<vmem>>, vector<128x128xbf16>
    %cst_14 = arith.constant dense<0.000000e+00> : vector<16x128xf32>
    %18 = tpu.matmul %16, %17, %cst_14 {dimension_numbers = #tpu.dot_dimension_numbers<[1], [0], [0], [1], [0, 0, 1, 1], [], []>} : vector<16x128xbf16>, vector<128x128xbf16>, vector<16x128xf32> -> vector<16x128xf32>
    %c0_15 = arith.constant 0 : index
    %c0_16 = arith.constant 0 : index
    %19 = vector.load %arg7[%c0_15, %c0_16] : memref<1x128xf32, #tpu.memory_space<vmem>>, vector<1x128xf32>
    %20 = vector.broadcast %19 : vector<1x128xf32> to vector<16x128xf32>
    %21 = arith.addf %18, %20 : vector<16x128xf32>
    %cst_17 = arith.constant dense<0xFF800000> : vector<16xf32>
    %22 = vector.multi_reduction <maximumf>, %21, %cst_17 [1] : vector<16x128xf32> to vector<16xf32>
    %23 = vector.shape_cast %22 : vector<16xf32> to vector<16x1xf32>
    %24 = vector.broadcast %23 : vector<16x1xf32> to vector<16x128xf32>
    %25 = arith.subf %21, %24 : vector<16x128xf32>
    %26 = math.exp %25 : vector<16x128xf32>
    %cst_18 = arith.constant dense<0.000000e+00> : vector<16xf32>
    %27 = vector.multi_reduction <add>, %26, %cst_18 [1] : vector<16x128xf32> to vector<16xf32>
    %28 = vector.shape_cast %27 : vector<16xf32> to vector<16x1xf32>
    %29 = math.log %28 : vector<16x1xf32>
    %30 = vector.broadcast %29 : vector<16x1xf32> to vector<16x128xf32>
    %31 = arith.subf %25, %30 : vector<16x128xf32>
    %c0_19 = arith.constant 0 : index
    %c0_20 = arith.constant 0 : index
    %32 = vector.load %arg8[%c0_19, %c0_20] : memref<16x128xf32, #tpu.memory_space<vmem>>, vector<16x128xf32>
    tpu.vector_store %arg8[%c0_19, %c0_20], %31 {strides = array<i32>} : memref<16x128xf32, #tpu.memory_space<vmem>>, vector<16x128xf32>,
    return
  }
  func.func @transform_0(%arg0: i32) -> (i32, i32) {
    %c0_i32 = arith.constant 0 : i32
    %c0_i32_0 = arith.constant 0 : i32
    return %arg0, %c0_i32 : i32, i32
  }
  func.func @transform_1(%arg0: i32) -> (i32, i32) {
    %c0_i32 = arith.constant 0 : i32
    %c0_i32_0 = arith.constant 0 : i32
    %c0_i32_1 = arith.constant 0 : i32
    return %c0_i32, %c0_i32_0 : i32, i32
  }
  func.func @transform_2(%arg0: i32) -> (i32, i32) {
    %c0_i32 = arith.constant 0 : i32
    %c0_i32_0 = arith.constant 0 : i32
    %c0_i32_1 = arith.constant 0 : i32
    return %c0_i32, %c0_i32_0 : i32, i32
  }
  func.func @transform_3(%arg0: i32) -> (i32, i32) {
    %c0_i32 = arith.constant 0 : i32
    %c0_i32_0 = arith.constant 0 : i32
    %c0_i32_1 = arith.constant 0 : i32
    return %c0_i32, %c0_i32_0 : i32, i32
  }
  func.func @transform_4(%arg0: i32) -> (i32, i32) {
    %c0_i32 = arith.constant 0 : i32
    %c0_i32_0 = arith.constant 0 : i32
    %c0_i32_1 = arith.constant 0 : i32
    return %c0_i32, %c0_i32_0 : i32, i32
  }
  func.func @transform_5(%arg0: i32) -> (i32, i32) {
    %c0_i32 = arith.constant 0 : i32
    %c0_i32_0 = arith.constant 0 : i32
    %c0_i32_1 = arith.constant 0 : i32
    return %c0_i32, %c0_i32_0 : i32, i32
  }
  func.func @transform_6(%arg0: i32) -> (i32, i32) {
    %c0_i32 = arith.constant 0 : i32
    %c0_i32_0 = arith.constant 0 : i32
    %c0_i32_1 = arith.constant 0 : i32
    return %c0_i32, %c0_i32_0 : i32, i32
  }
  func.func @transform_7(%arg0: i32) -> (i32, i32) {
    %c0_i32 = arith.constant 0 : i32
    %c0_i32_0 = arith.constant 0 : i32
    return %arg0, %c0_i32 : i32, i32
  }
}

module attributes {stable_mosaic.version = 11 : i64} {
  func.func @_fused_mlp_kernel(%arg0: i32, %arg1: memref<16x784xbf16, #tpu.memory_space<vmem>>, %arg2: memref<784x128xbf16, #tpu.memory_space<vmem>>, %arg3: memref<1x128xf32, #tpu.memory_space<vmem>>, %arg4: memref<128x128xbf16, #tpu.memory_space<vmem>>, %arg5: memref<1x128xf32, #tpu.memory_space<vmem>>, %arg6: memref<128x128xbf16, #tpu.memory_space<vmem>>, %arg7: memref<1x128xf32, #tpu.memory_space<vmem>>, %arg8: memref<16x128xf32, #tpu.memory_space<vmem>>) attributes {dimension_semantics = [#tpu.dimension_semantics<parallel>], iteration_bounds = array<i64: 1>, scalar_prefetch = 0 : i64, scratch_operands = 0 : i64, tpu.core_type = #tpu.core_type<tc>, window_params = [{transform_indices = @transform_0, window_bounds = array<i64: 16, 784>}, {pipeline_mode = #tpu.pipeline_mode<synchronous>, transform_indices = @transform_1, window_bounds = array<i64: 784, 128>}, {pipeline_mode = #tpu.pipeline_mode<synchronous>, transform_indices = @transform_2, window_bounds = array<i64: 1, 128>}, {pipeline_mode = #tpu.pipeline_mode<synchronous>, transform_indices = @transform_3, window_bounds = array<i64: 128, 128>}, {pipeline_mode = #tpu.pipeline_mode<synchronous>, transform_indices = @transform_4, window_bounds = array<i64: 1, 128>}, {pipeline_mode = #tpu.pipeline_mode<synchronous>, transform_indices = @transform_5, window_bounds = array<i64: 128, 128>}, {pipeline_mode = #tpu.pipeline_mode<synchronous>, transform_indices = @transform_6, window_bounds = array<i64: 1, 128>}, {transform_indices = @transform_7, window_bounds = array<i64: 16, 128>}]} {
    %c0 = arith.constant 0 : index
    %c0_0 = arith.constant 0 : index
    %0 = vector.load %arg1[%c0, %c0_0] : memref<16x784xbf16, #tpu.memory_space<vmem>>, vector<16x784xbf16>
    %c0_1 = arith.constant 0 : index
    %c0_2 = arith.constant 0 : index
    %1 = vector.load %arg2[%c0_1, %c0_2] : memref<784x128xbf16, #tpu.memory_space<vmem>>, vector<784x128xbf16>
    %c0_3 = arith.constant 0 : index
    %c0_4 = arith.constant 0 : index
    %2 = vector.load %arg3[%c0_3, %c0_4] : memref<1x128xf32, #tpu.memory_space<vmem>>, vector<1x128xf32>
    %cst = arith.constant dense<0.000000e+00> : vector<16x128xf32>
    %3 = tpu.matmul %0, %1, %cst {dimension_numbers = #tpu.dot_dimension_numbers<[1], [0], [0], [1], [0, 0, 1, 1], [], []>} : vector<16x784xbf16>, vector<784x128xbf16>, vector<16x128xf32> -> vector<16x128xf32>
    %4 = vector.broadcast %2 : vector<1x128xf32> to vector<16x128xf32>
    %5 = arith.addf %3, %4 : vector<16x128xf32>
    %cst_5 = arith.constant 0.000000e+00 : f32
    %6 = vector.broadcast %cst_5 : f32 to vector<16x128xf32>
    %7 = arith.maximumf %5, %6 : vector<16x128xf32>
    %8 = arith.truncf %7 : vector<16x128xf32> to vector<16x128xbf16>
    %c0_6 = arith.constant 0 : index
    %c0_7 = arith.constant 0 : index
    %9 = vector.load %arg4[%c0_6, %c0_7] : memref<128x128xbf16, #tpu.memory_space<vmem>>, vector<128x128xbf16>
    %c0_8 = arith.constant 0 : index
    %c0_9 = arith.constant 0 : index
    %10 = vector.load %arg5[%c0_8, %c0_9] : memref<1x128xf32, #tpu.memory_space<vmem>>, vector<1x128xf32>
    %cst_10 = arith.constant dense<0.000000e+00> : vector<16x128xf32>
    %11 = tpu.matmul %8, %9, %cst_10 {dimension_numbers = #tpu.dot_dimension_numbers<[1], [0], [0], [1], [0, 0, 1, 1], [], []>} : vector<16x128xbf16>, vector<128x128xbf16>, vector<16x128xf32> -> vector<16x128xf32>
    %12 = vector.broadcast %10 : vector<1x128xf32> to vector<16x128xf32>
    %13 = arith.addf %11, %12 : vector<16x128xf32>
    %cst_11 = arith.constant 0.000000e+00 : f32
    %14 = vector.broadcast %cst_11 : f32 to vector<16x128xf32>
    %15 = arith.maximumf %13, %14 : vector<16x128xf32>
    %16 = arith.truncf %15 : vector<16x128xf32> to vector<16x128xbf16>
    %c0_12 = arith.constant 0 : index
    %c0_13 = arith.constant 0 : index
    %17 = vector.load %arg6[%c0_12, %c0_13] : memref<128x128xbf16, #tpu.memory_space<vmem>>, vector<128x128xbf16>
    %cst_14 = arith.constant dense<0.000000e+00> : vector<16x128xf32>
    %18 = tpu.matmul %16, %17, %cst_14 {dimension_numbers = #tpu.dot_dimension_numbers<[1], [0], [0], [1], [0, 0, 1, 1], [], []>} : vector<16x128xbf16>, vector<128x128xbf16>, vector<16x128xf32> -> vector<16x128xf32>
    %c0_15 = arith.constant 0 : index
    %c0_16 = arith.constant 0 : index
    %19 = vector.load %arg7[%c0_15, %c0_16] : memref<1x128xf32, #tpu.memory_space<vmem>>, vector<1x128xf32>
    %20 = vector.broadcast %19 : vector<1x128xf32> to vector<16x128xf32>
    %21 = arith.addf %18, %20 : vector<16x128xf32>
    %cst_17 = arith.constant dense<0xFF800000> : vector<16xf32>
    %22 = vector.multi_reduction <maximumf>, %21, %cst_17 [1] : vector<16x128xf32> to vector<16xf32>
    %23 = vector.shape_cast %22 : vector<16xf32> to vector<16x1xf32>
    %24 = vector.broadcast %23 : vector<16x1xf32> to vector<16x128xf32>
    %25 = arith.subf %21, %24 : vector<16x128xf32>
    %26 = math.exp %25 : vector<16x128xf32>
    %cst_18 = arith.constant dense<0.000000e+00> : vector<16xf32>
    %27 = vector.multi_reduction <add>, %26, %cst_18 [1] : vector<16x128xf32> to vector<16xf32>
    %28 = vector.shape_cast %27 : vector<16xf32> to vector<16x1xf32>
    %29 = math.log %28 : vector<16x1xf32>
    %30 = vector.broadcast %29 : vector<16x1xf32> to vector<16x128xf32>
    %31 = arith.subf %25, %30 : vector<16x128xf32>
    %c0_19 = arith.constant 0 : index
    %c0_20 = arith.constant 0 : index
    %32 = vector.load %arg8[%c0_19, %c0_20] : memref<16x128xf32, #tpu.memory_space<vmem>>, vector<16x128xf32>
    tpu.vector_store %arg8[%c0_19, %c0_20], %31 {strides = array<i32>} : memref<16x128xf32, #tpu.memory_space<vmem>>, vector<16x128xf32>,
    return
  }
  func.func @transform_0(%arg0: i32) -> (i32, i32) {
    %c0_i32 = arith.constant 0 : i32
    %c0_i32_0 = arith.constant 0 : i32
    return %arg0, %c0_i32 : i32, i32
  }
  func.func @transform_1(%arg0: i32) -> (i32, i32) {
    %c0_i32 = arith.constant 0 : i32
    %c0_i32_0 = arith.constant 0 : i32
    %c0_i32_1 = arith.constant 0 : i32
    return %c0_i32, %c0_i32_0 : i32, i32
  }
  func.func @transform_2(%arg0: i32) -> (i32, i32) {
    %c0_i32 = arith.constant 0 : i32
    %c0_i32_0 = arith.constant 0 : i32
    %c0_i32_1 = arith.constant 0 : i32
    return %c0_i32, %c0_i32_0 : i32, i32
  }
  func.func @transform_3(%arg0: i32) -> (i32, i32) {
    %c0_i32 = arith.constant 0 : i32
    %c0_i32_0 = arith.constant 0 : i32
    %c0_i32_1 = arith.constant 0 : i32
    return %c0_i32, %c0_i32_0 : i32, i32
  }
  func.func @transform_4(%arg0: i32) -> (i32, i32) {
    %c0_i32 = arith.constant 0 : i32
    %c0_i32_0 = arith.constant 0 : i32
    %c0_i32_1 = arith.constant 0 : i32
    return %c0_i32, %c0_i32_0 : i32, i32
  }
  func.func @transform_5(%arg0: i32) -> (i32, i32) {
    %c0_i32 = arith.constant 0 : i32
    %c0_i32_0 = arith.constant 0 : i32
    %c0_i32_1 = arith.constant 0 : i32
    return %c0_i32, %c0_i32_0 : i32, i32
  }
  func.func @transform_6(%arg0: i32) -> (i32, i32) {
    %c0_i32 = arith.constant 0 : i32
    %c0_i32_0 = arith.constant 0 : i32
    %c0_i32_1 = arith.constant 0 : i32
    return %c0_i32, %c0_i32_0 : i32, i32
  }
  func.func @transform_7(%arg0: i32) -> (i32, i32) {
    %c0_i32 = arith.constant 0 : i32
    %c0_i32_0 = arith.constant 0 : i32
    return %arg0, %c0_i32 : i32, i32
  }
}

</mosaic_0001>

<llo_original>
// kernel: _mlp_forward_impl.1
$region0: #{_mlp_forward_impl.1}
  #allocation0 [shape = 'u32[]', space=smem, size = 0x4, offset = 0x4, fixed_abs, tag = 'smem constant byte address 0x4 - core index']
  #allocation1 [shape = 'u32[72,128]{1,0:T(1,128)}', space=vmem, size = 0x9000, scoped, tag = 'internal scratch']
  %s0 = inlined_call_operand.vmem [shape: bf16[16,784], index: 0, kind: input, shape index: {}]
  %s1 = inlined_call_operand.vmem [shape: bf16[784,128], index: 1, kind: input, shape index: {}]
  %s2 = inlined_call_operand.vmem [shape: f32[1,128], index: 2, kind: input, shape index: {}]
  %s3 = inlined_call_operand.vmem [shape: bf16[128,128], index: 3, kind: input, shape index: {}]
  %s4 = inlined_call_operand.vmem [shape: f32[1,128], index: 4, kind: input, shape index: {}]
  %s5 = inlined_call_operand.vmem [shape: bf16[128,128], index: 5, kind: input, shape index: {}]
  %s6 = inlined_call_operand.vmem [shape: f32[1,128], index: 6, kind: input, shape index: {}]
  %s7 = inlined_call_operand.vmem [shape: f32[16,128], index: 7, kind: output, shape index: {}]
  %s8 = sld [smem:[#allocation0]]
  $region38: #{_mlp_forward_impl.1} parent=0
    _
  %s10 = ssub.s32 1, %s8
  %s11 = scalar_select 0, %s10, %s8
  // Predicated region
  $region2: #{_mlp_forward_impl.1} parent=0 // pred_check
    _
  $region3: #{_mlp_forward_impl.1} parent=0 // pred_check_branch
    %13 = sbr.rel (0) target = $region5
  $region4: #{_mlp_forward_impl.1} parent=0 // pred_region
    _
  $region5: #{_mlp_forward_impl.1} parent=0 // pred_fallthru
    _
  // Predicated region
  $region6: #{_mlp_forward_impl.1} parent=0 // pred_check
    _
  $region7: #{_mlp_forward_impl.1} parent=0 // pred_check_branch
    %15 = sbr.rel (0) target = $region9
  $region8: #{_mlp_forward_impl.1} parent=0 // pred_region
    _
  $region9: #{_mlp_forward_impl.1} parent=0 // pred_fallthru
    _
  // Predicated region
  $region10: #{_mlp_forward_impl.1} parent=0 // pred_check
    _
  $region11: #{_mlp_forward_impl.1} parent=0 // pred_check_branch
    %17 = sbr.rel (0) target = $region13
  $region12: #{_mlp_forward_impl.1} parent=0 // pred_region
    _
  $region13: #{_mlp_forward_impl.1} parent=0 // pred_fallthru
    _
  // Predicated region
  $region14: #{_mlp_forward_impl.1} parent=0 // pred_check
    _
  $region15: #{_mlp_forward_impl.1} parent=0 // pred_check_branch
    %19 = sbr.rel (0) target = $region17
  $region16: #{_mlp_forward_impl.1} parent=0 // pred_region
    _
  $region17: #{_mlp_forward_impl.1} parent=0 // pred_fallthru
    _
  // Predicated region
  $region18: #{_mlp_forward_impl.1} parent=0 // pred_check
    _
  $region19: #{_mlp_forward_impl.1} parent=0 // pred_check_branch
    %21 = sbr.rel (0) target = $region21
  $region20: #{_mlp_forward_impl.1} parent=0 // pred_region
    _
  $region21: #{_mlp_forward_impl.1} parent=0 // pred_fallthru
    _
  // Predicated region
  $region22: #{_mlp_forward_impl.1} parent=0 // pred_check
    _
  $region23: #{_mlp_forward_impl.1} parent=0 // pred_check_branch
    %23 = sbr.rel (0) target = $region25
  $region24: #{_mlp_forward_impl.1} parent=0 // pred_region
    _
  $region25: #{_mlp_forward_impl.1} parent=0 // pred_fallthru
    _
  // Predicated region
  $region26: #{_mlp_forward_impl.1} parent=0 // pred_check
    _
  $region27: #{_mlp_forward_impl.1} parent=0 // pred_check_branch
    %25 = sbr.rel (0) target = $region29
  $region28: #{_mlp_forward_impl.1} parent=0 // pred_region
    _
  $region29: #{_mlp_forward_impl.1} parent=0 // pred_fallthru
    _
  %v27 = vld [vmem:[%s0] sm:$0xff]
  %v28 = vld [vmem:[%s0 + $0x8] sm:$0xff]
  %v29 = vld [vmem:[%s0 + $0x10] sm:$0xff]
  %v30 = vld [vmem:[%s0 + $0x18] sm:$0xf]
  %v31 = vld [vmem:[%s0 + $0x1c] sm:$0xff]
  %v32 = vld [vmem:[%s0 + $0x24] sm:$0xff]
  %v33 = vld [vmem:[%s0 + $0x2c] sm:$0xff]
  %v34 = vld [vmem:[%s0 + $0x34] sm:$0xf]
  %v35 = vld [vmem:[%s1] sm:$0xf]
  %v36 = vld [vmem:[%s1 + $0x4] sm:$0xf]
  %v37 = vld [vmem:[%s1 + $0x8] sm:$0xf]
  %v38 = vld [vmem:[%s1 + $0xc] sm:$0xf]
  %v39 = vld [vmem:[%s1 + $0x10] sm:$0xf]
  %v40 = vld [vmem:[%s1 + $0x14] sm:$0xf]
  %v41 = vld [vmem:[%s1 + $0x18] sm:$0xf]
  %v42 = vld [vmem:[%s1 + $0x1c] sm:$0xf]
  %v43 = vld [vmem:[%s1 + $0x20] sm:$0xf]
  %v44 = vld [vmem:[%s1 + $0x24] sm:$0xf]
  %v45 = vld [vmem:[%s1 + $0x28] sm:$0xf]
  %v46 = vld [vmem:[%s1 + $0x2c] sm:$0xf]
  %v47 = vld [vmem:[%s1 + $0x30] sm:$0xf]
  %v48 = vld [vmem:[%s1 + $0x34] sm:$0xf]
  %v49 = vld [vmem:[%s1 + $0x38] sm:$0xf]
  %v50 = vld [vmem:[%s1 + $0x3c] sm:$0xf]
  %v51 = vld [vmem:[%s1 + $0x40] sm:$0xf]
  %v52 = vld [vmem:[%s1 + $0x44] sm:$0xf]
  %v53 = vld [vmem:[%s1 + $0x48] sm:$0xf]
  %v54 = vld [vmem:[%s1 + $0x4c] sm:$0xf]
  %v55 = vld [vmem:[%s1 + $0x50] sm:$0xf]
  %v56 = vld [vmem:[%s1 + $0x54] sm:$0xf]
  %v57 = vld [vmem:[%s1 + $0x58] sm:$0xf]
  %v58 = vld [vmem:[%s1 + $0x5c] sm:$0xf]
  %v59 = vld [vmem:[%s1 + $0x60] sm:$0xf]
  %v60 = vld [vmem:[%s1 + $0x64] sm:$0xf]
  %v61 = vld [vmem:[%s1 + $0x68] sm:$0xf]
  %v62 = vld [vmem:[%s1 + $0x6c] sm:$0xf]
  %v63 = vld [vmem:[%s1 + $0x70] sm:$0xf]
  %v64 = vld [vmem:[%s1 + $0x74] sm:$0xf]
  %v65 = vld [vmem:[%s1 + $0x78] sm:$0xf]
  %v66 = vld [vmem:[%s1 + $0x7c] sm:$0xf]
  %v67 = vld [vmem:[%s1 + $0x80] sm:$0xf]
  %v68 = vld [vmem:[%s1 + $0x84] sm:$0xf]
  %v69 = vld [vmem:[%s1 + $0x88] sm:$0xf]
  %v70 = vld [vmem:[%s1 + $0x8c] sm:$0xf]
  %v71 = vld [vmem:[%s1 + $0x90] sm:$0xf]
  %v72 = vld [vmem:[%s1 + $0x94] sm:$0xf]
  %v73 = vld [vmem:[%s1 + $0x98] sm:$0xf]
  %v74 = vld [vmem:[%s1 + $0x9c] sm:$0xf]
  %v75 = vld [vmem:[%s1 + $0xa0] sm:$0xf]
  %v76 = vld [vmem:[%s1 + $0xa4] sm:$0xf]
  %v77 = vld [vmem:[%s1 + $0xa8] sm:$0xf]
  %v78 = vld [vmem:[%s1 + $0xac] sm:$0xf]
  %v79 = vld [vmem:[%s1 + $0xb0] sm:$0xf]
  %v80 = vld [vmem:[%s1 + $0xb4] sm:$0xf]
  %v81 = vld [vmem:[%s1 + $0xb8] sm:$0xf]
  %v82 = vld [vmem:[%s1 + $0xbc] sm:$0xf]
  %v83 = vld [vmem:[%s1 + $0xc0] sm:$0xf]
  %v84 = vld [vmem:[%s1 + $0xc4] sm:$0xf]
  %v85 = vld [vmem:[%s1 + $0xc8] sm:$0xf]
  %v86 = vld [vmem:[%s1 + $0xcc] sm:$0xf]
  %v87 = vld [vmem:[%s1 + $0xd0] sm:$0xf]
  %v88 = vld [vmem:[%s1 + $0xd4] sm:$0xf]
  %v89 = vld [vmem:[%s1 + $0xd8] sm:$0xf]
  %v90 = vld [vmem:[%s1 + $0xdc] sm:$0xf]
  %v91 = vld [vmem:[%s1 + $0xe0] sm:$0xf]
  %v92 = vld [vmem:[%s1 + $0xe4] sm:$0xf]
  %v93 = vld [vmem:[%s1 + $0xe8] sm:$0xf]
  %v94 = vld [vmem:[%s1 + $0xec] sm:$0xf]
  %v95 = vld [vmem:[%s1 + $0xf0] sm:$0xf]
  %v96 = vld [vmem:[%s1 + $0xf4] sm:$0xf]
  %v97 = vld [vmem:[%s1 + $0xf8] sm:$0xf]
  %v98 = vld [vmem:[%s1 + $0xfc] sm:$0xf]
  %v99 = vld [vmem:[%s1 + $0x100] sm:$0xf]
  %v100 = vld [vmem:[%s1 + $0x104] sm:$0xf]
  %v101 = vld [vmem:[%s1 + $0x108] sm:$0xf]
  %v102 = vld [vmem:[%s1 + $0x10c] sm:$0xf]
  %v103 = vld [vmem:[%s1 + $0x110] sm:$0xf]
  %v104 = vld [vmem:[%s1 + $0x114] sm:$0xf]
  %v105 = vld [vmem:[%s1 + $0x118] sm:$0xf]
  %v106 = vld [vmem:[%s1 + $0x11c] sm:$0xf]
  %v107 = vld [vmem:[%s1 + $0x120] sm:$0xf]
  %v108 = vld [vmem:[%s1 + $0x124] sm:$0xf]
  %v109 = vld [vmem:[%s1 + $0x128] sm:$0xf]
  %v110 = vld [vmem:[%s1 + $0x12c] sm:$0xf]
  %v111 = vld [vmem:[%s1 + $0x130] sm:$0xf]
  %v112 = vld [vmem:[%s1 + $0x134] sm:$0xf]
  %v113 = vld [vmem:[%s1 + $0x138] sm:$0xf]
  %v114 = vld [vmem:[%s1 + $0x13c] sm:$0xf]
  %v115 = vld [vmem:[%s1 + $0x140] sm:$0xf]
  %v116 = vld [vmem:[%s1 + $0x144] sm:$0xf]
  %v117 = vld [vmem:[%s1 + $0x148] sm:$0xf]
  %v118 = vld [vmem:[%s1 + $0x14c] sm:$0xf]
  %v119 = vld [vmem:[%s1 + $0x150] sm:$0xf]
  %v120 = vld [vmem:[%s1 + $0x154] sm:$0xf]
  %v121 = vld [vmem:[%s1 + $0x158] sm:$0xf]
  %v122 = vld [vmem:[%s1 + $0x15c] sm:$0xf]
  %v123 = vld [vmem:[%s1 + $0x160] sm:$0xf]
  %v124 = vld [vmem:[%s1 + $0x164] sm:$0xf]
  %v125 = vld [vmem:[%s1 + $0x168] sm:$0xf]
  %v126 = vld [vmem:[%s1 + $0x16c] sm:$0xf]
  %v127 = vld [vmem:[%s1 + $0x170] sm:$0xf]
  %v128 = vld [vmem:[%s1 + $0x174] sm:$0xf]
  %v129 = vld [vmem:[%s1 + $0x178] sm:$0xf]
  %v130 = vld [vmem:[%s1 + $0x17c] sm:$0xf]
  %v131 = vld [vmem:[%s1 + $0x180] sm:$0xf]
  %v132 = vld [vmem:[%s1 + $0x184] sm:$0xf]
  %v133 = vld [vmem:[%s2] sm:$0x1]
  %v135 = vperm.slane %v133, 0
  %v145 = vunpack.c.l.b16 %v27
  %v146 = vunpack.c.h.b16 %v27
  %v147 = vunpack.c.l.b16 %v28
  %v148 = vunpack.c.h.b16 %v28
  %v149 = vunpack.c.l.b16 %v29
  %v150 = vunpack.c.h.b16 %v29
  %v151 = vunpack.c.l.b16 %v30
  %v152 = vunpack.c.l.b16 %v31
  %v153 = vunpack.c.h.b16 %v31
  %v154 = vunpack.c.l.b16 %v32
  %v155 = vunpack.c.h.b16 %v32
  %v156 = vunpack.c.l.b16 %v33
  %v157 = vunpack.c.h.b16 %v33
  %v158 = vunpack.c.l.b16 %v34
  %v159 = vpack.c.b16 %v152, %v145
  %v160 = vpack.c.b16 %v153, %v146
  %v161 = vpack.c.b16 %v154, %v147
  %v162 = vpack.c.b16 %v155, %v148
  %v163 = vpack.c.b16 %v156, %v149
  %v164 = vpack.c.b16 %v157, %v150
  %v165 = vpack.c.b16 %v158, %v151
  %v270 = vunpack.c.l.b16 %v35
  %v271 = vunpack.c.l.b16 %v36
  %v272 = vunpack.c.l.b16 %v37
  %v273 = vunpack.c.l.b16 %v38
  %v274 = vunpack.c.l.b16 %v39
  %v275 = vunpack.c.l.b16 %v40
  %v276 = vunpack.c.l.b16 %v41
  %v277 = vunpack.c.l.b16 %v42
  %v278 = vunpack.c.l.b16 %v43
  %v279 = vunpack.c.l.b16 %v44
  %v280 = vunpack.c.l.b16 %v45
  %v281 = vunpack.c.l.b16 %v46
  %v282 = vunpack.c.l.b16 %v47
  %v283 = vunpack.c.l.b16 %v48
  %v284 = vunpack.c.l.b16 %v49
  %v285 = vunpack.c.l.b16 %v50
  %v286 = vunpack.c.l.b16 %v51
  %v287 = vunpack.c.l.b16 %v52
  %v288 = vunpack.c.l.b16 %v53
  %v289 = vunpack.c.l.b16 %v54
  %v290 = vunpack.c.l.b16 %v55
  %v291 = vunpack.c.l.b16 %v56
  %v292 = vunpack.c.l.b16 %v57
  %v293 = vunpack.c.l.b16 %v58
  %v294 = vunpack.c.l.b16 %v59
  %v295 = vunpack.c.l.b16 %v60
  %v296 = vunpack.c.l.b16 %v61
  %v297 = vunpack.c.l.b16 %v62
  %v298 = vunpack.c.l.b16 %v63
  %v299 = vunpack.c.l.b16 %v64
  %v300 = vunpack.c.l.b16 %v65
  %v301 = vunpack.c.l.b16 %v66
  %v302 = vunpack.c.l.b16 %v67
  %v303 = vunpack.c.l.b16 %v68
  %v304 = vunpack.c.l.b16 %v69
  %v305 = vunpack.c.l.b16 %v70
  %v306 = vunpack.c.l.b16 %v71
  %v307 = vunpack.c.l.b16 %v72
  %v308 = vunpack.c.l.b16 %v73
  %v309 = vunpack.c.l.b16 %v74
  %v310 = vunpack.c.l.b16 %v75
  %v311 = vunpack.c.l.b16 %v76
  %v312 = vunpack.c.l.b16 %v77
  %v313 = vunpack.c.l.b16 %v78
  %v314 = vunpack.c.l.b16 %v79
  %v315 = vunpack.c.l.b16 %v80
  %v316 = vunpack.c.l.b16 %v81
  %v317 = vunpack.c.l.b16 %v82
  %v318 = vunpack.c.l.b16 %v83
  %v319 = vunpack.c.l.b16 %v84
  %v320 = vunpack.c.l.b16 %v85
  %v321 = vunpack.c.l.b16 %v86
  %v322 = vunpack.c.l.b16 %v87
  %v323 = vunpack.c.l.b16 %v88
  %v324 = vunpack.c.l.b16 %v89
  %v325 = vunpack.c.l.b16 %v90
  %v326 = vunpack.c.l.b16 %v91
  %v327 = vunpack.c.l.b16 %v92
  %v328 = vunpack.c.l.b16 %v93
  %v329 = vunpack.c.l.b16 %v94
  %v330 = vunpack.c.l.b16 %v95
  %v331 = vunpack.c.l.b16 %v96
  %v332 = vunpack.c.l.b16 %v97
  %v333 = vunpack.c.l.b16 %v98
  %v334 = vunpack.c.l.b16 %v99
  %v335 = vunpack.c.l.b16 %v100
  %v336 = vunpack.c.l.b16 %v101
  %v337 = vunpack.c.l.b16 %v102
  %v338 = vunpack.c.l.b16 %v103
  %v339 = vunpack.c.l.b16 %v104
  %v340 = vunpack.c.l.b16 %v105
  %v341 = vunpack.c.l.b16 %v106
  %v342 = vunpack.c.l.b16 %v107
  %v343 = vunpack.c.l.b16 %v108
  %v344 = vunpack.c.l.b16 %v109
  %v345 = vunpack.c.l.b16 %v110
  %v346 = vunpack.c.l.b16 %v111
  %v347 = vunpack.c.l.b16 %v112
  %v348 = vunpack.c.l.b16 %v113
  %v349 = vunpack.c.l.b16 %v114
  %v350 = vunpack.c.l.b16 %v115
  %v351 = vunpack.c.l.b16 %v116
  %v352 = vunpack.c.l.b16 %v117
  %v353 = vunpack.c.l.b16 %v118
  %v354 = vunpack.c.l.b16 %v119
  %v355 = vunpack.c.l.b16 %v120
  %v356 = vunpack.c.l.b16 %v121
  %v357 = vunpack.c.l.b16 %v122
  %v358 = vunpack.c.l.b16 %v123
  %v359 = vunpack.c.l.b16 %v124
  %v360 = vunpack.c.l.b16 %v125
  %v361 = vunpack.c.l.b16 %v126
  %v362 = vunpack.c.l.b16 %v127
  %v363 = vunpack.c.l.b16 %v128
  %v364 = vunpack.c.l.b16 %v129
  %v365 = vunpack.c.l.b16 %v130
  %v366 = vunpack.c.l.b16 %v131
  %v367 = vunpack.c.l.b16 %v132
  %v368 = vpack.c.b16 %v271, %v270
  %v369 = vpack.c.b16 %v273, %v272
  %v370 = vpack.c.b16 %v275, %v274
  %v371 = vpack.c.b16 %v277, %v276
  %v372 = vpack.c.b16 %v279, %v278
  %v373 = vpack.c.b16 %v281, %v280
  %v374 = vpack.c.b16 %v283, %v282
  %v375 = vpack.c.b16 %v285, %v284
  %v376 = vpack.c.b16 %v287, %v286
  %v377 = vpack.c.b16 %v289, %v288
  %v378 = vpack.c.b16 %v291, %v290
  %v379 = vpack.c.b16 %v293, %v292
  %v380 = vpack.c.b16 %v295, %v294
  %v381 = vpack.c.b16 %v297, %v296
  %v382 = vpack.c.b16 %v299, %v298
  %v383 = vpack.c.b16 %v301, %v300
  %v384 = vpack.c.b16 %v303, %v302
  %v385 = vpack.c.b16 %v305, %v304
  %v386 = vpack.c.b16 %v307, %v306
  %v387 = vpack.c.b16 %v309, %v308
  %v388 = vpack.c.b16 %v311, %v310
  %v389 = vpack.c.b16 %v313, %v312
  %v390 = vpack.c.b16 %v315, %v314
  %v391 = vpack.c.b16 %v317, %v316
  %v392 = vpack.c.b16 %v319, %v318
  %v393 = vpack.c.b16 %v321, %v320
  %v394 = vpack.c.b16 %v323, %v322
  %v395 = vpack.c.b16 %v325, %v324
  %v396 = vpack.c.b16 %v327, %v326
  %v397 = vpack.c.b16 %v329, %v328
  %v398 = vpack.c.b16 %v331, %v330
  %v399 = vpack.c.b16 %v333, %v332
  %v400 = vpack.c.b16 %v335, %v334
  %v401 = vpack.c.b16 %v337, %v336
  %v402 = vpack.c.b16 %v339, %v338
  %v403 = vpack.c.b16 %v341, %v340
  %v404 = vpack.c.b16 %v343, %v342
  %v405 = vpack.c.b16 %v345, %v344
  %v406 = vpack.c.b16 %v347, %v346
  %v407 = vpack.c.b16 %v349, %v348
  %v408 = vpack.c.b16 %v351, %v350
  %v409 = vpack.c.b16 %v353, %v352
  %v410 = vpack.c.b16 %v355, %v354
  %v411 = vpack.c.b16 %v357, %v356
  %v412 = vpack.c.b16 %v359, %v358
  %v413 = vpack.c.b16 %v361, %v360
  %v414 = vpack.c.b16 %v363, %v362
  %v415 = vpack.c.b16 %v365, %v364
  %v416 = vpack.c.b16 %v367, %v366
  %vm466 = vcmask 130048
  %v468 = vsel %vm466, %v165, 0
  %470 = vmatpush.bf16.msra.mxu0 %v375
  %471 = vmatpush.bf16.msra.mxu0 %v374
  %472 = vmatpush.bf16.msra.mxu0 %v373
  %473 = vmatpush.bf16.msra.mxu0 %v372
  %474 = vmatpush.bf16.msra.mxu0 %v371
  %475 = vmatpush.bf16.msra.mxu0 %v370
  %476 = vmatpush.bf16.msra.mxu0 %v369
  %477 = vmatpush.bf16.msra.mxu0 %v368
  %478 = vmatmul.bf16.gmra.mxu0 %v159
  %v479 = vpop.f32.mrf.mxu0
  %v480 = vadd.f32 %v135, %v479
  %v481 = vpop.f32.mrf.mxu0
  %v482 = vadd.f32 %v135, %v481
  %483 = vdwg.mxu0
  %484 = vmatpush.bf16.msra.mxu0 %v383
  %485 = vmatpush.bf16.msra.mxu0 %v382
  %486 = vmatpush.bf16.msra.mxu0 %v381
  %487 = vmatpush.bf16.msra.mxu0 %v380
  %488 = vmatpush.bf16.msra.mxu0 %v379
  %489 = vmatpush.bf16.msra.mxu0 %v378
  %490 = vmatpush.bf16.msra.mxu0 %v377
  %491 = vmatpush.bf16.msra.mxu0 %v376
  %492 = vmatmul.bf16.gmra.mxu0 %v160
  %v493 = vpop.f32.mrf.mxu0
  %v494 = vadd.f32 %v480, %v493
  %v495 = vpop.f32.mrf.mxu0
  %v496 = vadd.f32 %v482, %v495
  %497 = vdwg.mxu0
  %498 = vmatpush.bf16.msra.mxu0 %v391
  %499 = vmatpush.bf16.msra.mxu0 %v390
  %500 = vmatpush.bf16.msra.mxu0 %v389
  %501 = vmatpush.bf16.msra.mxu0 %v388
  %502 = vmatpush.bf16.msra.mxu0 %v387
  %503 = vmatpush.bf16.msra.mxu0 %v386
  %504 = vmatpush.bf16.msra.mxu0 %v385
  %505 = vmatpush.bf16.msra.mxu0 %v384
  %506 = vmatmul.bf16.gmra.mxu0 %v161
  %v507 = vpop.f32.mrf.mxu0
  %v508 = vadd.f32 %v494, %v507
  %v509 = vpop.f32.mrf.mxu0
  %v510 = vadd.f32 %v496, %v509
  %511 = vdwg.mxu0
  %512 = vmatpush.bf16.msra.mxu0 %v399
  %513 = vmatpush.bf16.msra.mxu0 %v398
  %514 = vmatpush.bf16.msra.mxu0 %v397
  %515 = vmatpush.bf16.msra.mxu0 %v396
  %516 = vmatpush.bf16.msra.mxu0 %v395
  %517 = vmatpush.bf16.msra.mxu0 %v394
  %518 = vmatpush.bf16.msra.mxu0 %v393
  %519 = vmatpush.bf16.msra.mxu0 %v392
  %520 = vmatmul.bf16.gmra.mxu0 %v162
  %v521 = vpop.f32.mrf.mxu0
  %v522 = vadd.f32 %v508, %v521
  %v523 = vpop.f32.mrf.mxu0
  %v524 = vadd.f32 %v510, %v523
  %525 = vdwg.mxu0
  %526 = vmatpush.bf16.msra.mxu0 %v407
  %527 = vmatpush.bf16.msra.mxu0 %v406
  %528 = vmatpush.bf16.msra.mxu0 %v405
  %529 = vmatpush.bf16.msra.mxu0 %v404
  %530 = vmatpush.bf16.msra.mxu0 %v403
  %531 = vmatpush.bf16.msra.mxu0 %v402
  %532 = vmatpush.bf16.msra.mxu0 %v401
  %533 = vmatpush.bf16.msra.mxu0 %v400
  %534 = vmatmul.bf16.gmra.mxu0 %v163
  %v535 = vpop.f32.mrf.mxu0
  %v536 = vadd.f32 %v522, %v535
  %v537 = vpop.f32.mrf.mxu0
  %v538 = vadd.f32 %v524, %v537
  %539 = vdwg.mxu0
  %540 = vmatpush.bf16.msra.mxu0 %v415
  %541 = vmatpush.bf16.msra.mxu0 %v414
  %542 = vmatpush.bf16.msra.mxu0 %v413
  %543 = vmatpush.bf16.msra.mxu0 %v412
  %544 = vmatpush.bf16.msra.mxu0 %v411
  %545 = vmatpush.bf16.msra.mxu0 %v410
  %546 = vmatpush.bf16.msra.mxu0 %v409
  %547 = vmatpush.bf16.msra.mxu0 %v408
  %548 = vmatmul.bf16.gmra.mxu0 %v164
  %v549 = vpop.f32.mrf.mxu0
  %v550 = vadd.f32 %v536, %v549
  %v551 = vpop.f32.mrf.mxu0
  %v552 = vadd.f32 %v538, %v551
  %553 = vdwg.mxu0
  %554 = vmatpush.bf16.msra.mxu0 0
  %555 = vmatpush.bf16.msra.mxu0 0
  %556 = vmatpush.bf16.msra.mxu0 0
  %557 = vmatpush.bf16.msra.mxu0 0
  %558 = vmatpush.bf16.msra.mxu0 0
  %559 = vmatpush.bf16.msra.mxu0 0
  %560 = vmatpush.bf16.msra.mxu0 0
  %561 = vmatpush.bf16.msra.mxu0 %v416
  %562 = vmatmul.bf16.gmra.mxu0 %v468
  %v563 = vpop.f32.mrf.mxu0
  %v564 = vadd.f32 %v550, %v563
  %v565 = vpop.f32.mrf.mxu0
  %v566 = vadd.f32 %v552, %v565
  %567 = vdwg.mxu0
  %v568 = vmax.f32 %v564, 0.0
  %v569 = vmax.f32 %v566, 0.0
  %v570 = vpack.c.bf16 %v569, %v568
  %v571 = vld [vmem:[%s3] sm:$0xf]
  %v572 = vld [vmem:[%s3 + $0x4] sm:$0xf]
  %v573 = vld [vmem:[%s3 + $0x8] sm:$0xf]
  %v574 = vld [vmem:[%s3 + $0xc] sm:$0xf]
  %v575 = vld [vmem:[%s3 + $0x10] sm:$0xf]
  %v576 = vld [vmem:[%s3 + $0x14] sm:$0xf]
  %v577 = vld [vmem:[%s3 + $0x18] sm:$0xf]
  %v578 = vld [vmem:[%s3 + $0x1c] sm:$0xf]
  %v579 = vld [vmem:[%s3 + $0x20] sm:$0xf]
  %v580 = vld [vmem:[%s3 + $0x24] sm:$0xf]
  %v581 = vld [vmem:[%s3 + $0x28] sm:$0xf]
  %v582 = vld [vmem:[%s3 + $0x2c] sm:$0xf]
  %v583 = vld [vmem:[%s3 + $0x30] sm:$0xf]
  %v584 = vld [vmem:[%s3 + $0x34] sm:$0xf]
  %v585 = vld [vmem:[%s3 + $0x38] sm:$0xf]
  %v586 = vld [vmem:[%s3 + $0x3c] sm:$0xf]
  %v587 = vld [vmem:[%s4] sm:$0x1]
  %v589 = vperm.slane %v587, 0
  %v607 = vunpack.c.l.b16 %v571
  %v608 = vunpack.c.l.b16 %v572
  %v609 = vunpack.c.l.b16 %v573
  %v610 = vunpack.c.l.b16 %v574
  %v611 = vunpack.c.l.b16 %v575
  %v612 = vunpack.c.l.b16 %v576
  %v613 = vunpack.c.l.b16 %v577
  %v614 = vunpack.c.l.b16 %v578
  %v615 = vunpack.c.l.b16 %v579
  %v616 = vunpack.c.l.b16 %v580
  %v617 = vunpack.c.l.b16 %v581
  %v618 = vunpack.c.l.b16 %v582
  %v619 = vunpack.c.l.b16 %v583
  %v620 = vunpack.c.l.b16 %v584
  %v621 = vunpack.c.l.b16 %v585
  %v622 = vunpack.c.l.b16 %v586
  %v623 = vpack.c.b16 %v608, %v607
  %v624 = vpack.c.b16 %v610, %v609
  %v625 = vpack.c.b16 %v612, %v611
  %v626 = vpack.c.b16 %v614, %v613
  %v627 = vpack.c.b16 %v616, %v615
  %v628 = vpack.c.b16 %v618, %v617
  %v629 = vpack.c.b16 %v620, %v619
  %v630 = vpack.c.b16 %v622, %v621
  %639 = vmatpush.bf16.msra.mxu0 %v630
  %640 = vmatpush.bf16.msra.mxu0 %v629
  %641 = vmatpush.bf16.msra.mxu0 %v628
  %642 = vmatpush.bf16.msra.mxu0 %v627
  %643 = vmatpush.bf16.msra.mxu0 %v626
  %644 = vmatpush.bf16.msra.mxu0 %v625
  %645 = vmatpush.bf16.msra.mxu0 %v624
  %646 = vmatpush.bf16.msra.mxu0 %v623
  %647 = vmatmul.bf16.gmra.mxu0 %v570
  %v648 = vpop.f32.mrf.mxu0
  %v649 = vadd.f32 %v589, %v648
  %v650 = vpop.f32.mrf.mxu0
  %v651 = vadd.f32 %v589, %v650
  %652 = vdwg.mxu0
  %v653 = vmax.f32 %v649, 0.0
  %v654 = vmax.f32 %v651, 0.0
  %v655 = vpack.c.bf16 %v654, %v653
  %v656 = vld [vmem:[%s5] sm:$0xf]
  %v657 = vld [vmem:[%s5 + $0x4] sm:$0xf]
  %v658 = vld [vmem:[%s5 + $0x8] sm:$0xf]
  %v659 = vld [vmem:[%s5 + $0xc] sm:$0xf]
  %v660 = vld [vmem:[%s5 + $0x10] sm:$0xf]
  %v661 = vld [vmem:[%s5 + $0x14] sm:$0xf]
  %v662 = vld [vmem:[%s5 + $0x18] sm:$0xf]
  %v663 = vld [vmem:[%s5 + $0x1c] sm:$0xf]
  %v664 = vld [vmem:[%s5 + $0x20] sm:$0xf]
  %v665 = vld [vmem:[%s5 + $0x24] sm:$0xf]
  %v666 = vld [vmem:[%s5 + $0x28] sm:$0xf]
  %v667 = vld [vmem:[%s5 + $0x2c] sm:$0xf]
  %v668 = vld [vmem:[%s5 + $0x30] sm:$0xf]
  %v669 = vld [vmem:[%s5 + $0x34] sm:$0xf]
  %v670 = vld [vmem:[%s5 + $0x38] sm:$0xf]
  %v671 = vld [vmem:[%s5 + $0x3c] sm:$0xf]
  %v672 = vld [vmem:[%s6] sm:$0x1]
  %v674 = vperm.slane %v672, 0
  %v692 = vunpack.c.l.b16 %v656
  %v693 = vunpack.c.l.b16 %v657
  %v694 = vunpack.c.l.b16 %v658
  %v695 = vunpack.c.l.b16 %v659
  %v696 = vunpack.c.l.b16 %v660
  %v697 = vunpack.c.l.b16 %v661
  %v698 = vunpack.c.l.b16 %v662
  %v699 = vunpack.c.l.b16 %v663
  %v700 = vunpack.c.l.b16 %v664
  %v701 = vunpack.c.l.b16 %v665
  %v702 = vunpack.c.l.b16 %v666
  %v703 = vunpack.c.l.b16 %v667
  %v704 = vunpack.c.l.b16 %v668
  %v705 = vunpack.c.l.b16 %v669
  %v706 = vunpack.c.l.b16 %v670
  %v707 = vunpack.c.l.b16 %v671
  %v708 = vpack.c.b16 %v693, %v692
  %v709 = vpack.c.b16 %v695, %v694
  %v710 = vpack.c.b16 %v697, %v696
  %v711 = vpack.c.b16 %v699, %v698
  %v712 = vpack.c.b16 %v701, %v700
  %v713 = vpack.c.b16 %v703, %v702
  %v714 = vpack.c.b16 %v705, %v704
  %v715 = vpack.c.b16 %v707, %v706
  %724 = vmatpush.bf16.msra.mxu0 %v715
  %725 = vmatpush.bf16.msra.mxu0 %v714
  %726 = vmatpush.bf16.msra.mxu0 %v713
  %727 = vmatpush.bf16.msra.mxu0 %v712
  %728 = vmatpush.bf16.msra.mxu0 %v711
  %729 = vmatpush.bf16.msra.mxu0 %v710
  %730 = vmatpush.bf16.msra.mxu0 %v709
  %731 = vmatpush.bf16.msra.mxu0 %v708
  %732 = vmatmul.bf16.gmra.mxu0 %v655
  %v733 = vpop.f32.mrf.mxu0
  %v734 = vadd.f32 %v674, %v733
  %v735 = vpop.f32.mrf.mxu0
  %v736 = vadd.f32 %v674, %v735
  %737 = vdwg.mxu0
  %738 = vmax.xlane.f32.xlu0 %v734
  %v739 = vpop.xlane.xlu0 %738
  %740 = vmax.xlane.f32.xlu0 %v736
  %v741 = vpop.xlane.xlu0 %740
  %v742 = vsub.f32 %v734, %v739
  %v743 = vsub.f32 %v736, %v741
  %v744 = vmul.f32 %v742, 1.442695
  %v745 = vpow.pop %v744
  %v746 = vmul.f32 %v743, 1.442695
  %v747 = vpow.pop %v746
  %748 = vadd.xlane.f32.xlu0 %v745
  %v749 = vpop.xlane.xlu0 %748
  %750 = vadd.xlane.f32.xlu0 %v747
  %v751 = vpop.xlane.xlu0 %750
  %v752 = vlog2.pop %v749
  %v753 = vmul.f32 %v752, 0.6931472
  %v754 = vlog2.pop %v751
  %v755 = vmul.f32 %v754, 0.6931472
  %v756 = vsub.f32 %v742, %v753
  %v757 = vsub.f32 %v743, %v755
  %758 = vst [vmem:[%s7] sm:$0xff] %v756
  %759 = vst [vmem:[%s7 + $0x8] sm:$0xff] %v757
  // Predicated region
  $region30: #{_mlp_forward_impl.1} parent=0 // pred_check
    _
  $region31: #{_mlp_forward_impl.1} parent=0 // pred_check_branch
    %761 = sbr.rel (0) target = $region33
  $region32: #{_mlp_forward_impl.1} parent=0 // pred_region
    _
  $region33: #{_mlp_forward_impl.1} parent=0 // pred_fallthru
    _
  // Predicated region
  $region34: #{_mlp_forward_impl.1} parent=0 // pred_check
    _
  $region35: #{_mlp_forward_impl.1} parent=0 // pred_check_branch
    %763 = sbr.rel (0) target = $region37
  $region36: #{_mlp_forward_impl.1} parent=0 // pred_region
    _
  $region37: #{_mlp_forward_impl.1} parent=0 // pred_fallthru
    _

// kernel: _mlp_forward_impl.1
$region0: #{_mlp_forward_impl.1}
  #allocation0 [shape = 'u32[]', space=smem, size = 0x4, offset = 0x4, fixed_abs, tag = 'smem constant byte address 0x4 - core index']
  #allocation1 [shape = 'u32[72,128]{1,0:T(1,128)}', space=vmem, size = 0x9000, scoped, tag = 'internal scratch']
  %s0 = inlined_call_operand.vmem [shape: bf16[16,784], index: 0, kind: input, shape index: {}]
  %s1 = inlined_call_operand.vmem [shape: bf16[784,128], index: 1, kind: input, shape index: {}]
  %s2 = inlined_call_operand.vmem [shape: f32[1,128], index: 2, kind: input, shape index: {}]
  %s3 = inlined_call_operand.vmem [shape: bf16[128,128], index: 3, kind: input, shape index: {}]
  %s4 = inlined_call_operand.vmem [shape: f32[1,128], index: 4, kind: input, shape index: {}]
  %s5 = inlined_call_operand.vmem [shape: bf16[128,128], index: 5, kind: input, shape index: {}]
  %s6 = inlined_call_operand.vmem [shape: f32[1,128], index: 6, kind: input, shape index: {}]
  %s7 = inlined_call_operand.vmem [shape: f32[16,128], index: 7, kind: output, shape index: {}]
  %s8 = sld [smem:[#allocation0]]
  $region38: #{_mlp_forward_impl.1} parent=0
    _
  %s10 = ssub.s32 1, %s8
  %s11 = scalar_select 0, %s10, %s8
  // Predicated region
  $region2: #{_mlp_forward_impl.1} parent=0 // pred_check
    _
  $region3: #{_mlp_forward_impl.1} parent=0 // pred_check_branch
    %13 = sbr.rel (0) target = $region5
  $region4: #{_mlp_forward_impl.1} parent=0 // pred_region
    _
  $region5: #{_mlp_forward_impl.1} parent=0 // pred_fallthru
    _
  // Predicated region
  $region6: #{_mlp_forward_impl.1} parent=0 // pred_check
    _
  $region7: #{_mlp_forward_impl.1} parent=0 // pred_check_branch
    %15 = sbr.rel (0) target = $region9
  $region8: #{_mlp_forward_impl.1} parent=0 // pred_region
    _
  $region9: #{_mlp_forward_impl.1} parent=0 // pred_fallthru
    _
  // Predicated region
  $region10: #{_mlp_forward_impl.1} parent=0 // pred_check
    _
  $region11: #{_mlp_forward_impl.1} parent=0 // pred_check_branch
    %17 = sbr.rel (0) target = $region13
  $region12: #{_mlp_forward_impl.1} parent=0 // pred_region
    _
  $region13: #{_mlp_forward_impl.1} parent=0 // pred_fallthru
    _
  // Predicated region
  $region14: #{_mlp_forward_impl.1} parent=0 // pred_check
    _
  $region15: #{_mlp_forward_impl.1} parent=0 // pred_check_branch
    %19 = sbr.rel (0) target = $region17
  $region16: #{_mlp_forward_impl.1} parent=0 // pred_region
    _
  $region17: #{_mlp_forward_impl.1} parent=0 // pred_fallthru
    _
  // Predicated region
  $region18: #{_mlp_forward_impl.1} parent=0 // pred_check
    _
  $region19: #{_mlp_forward_impl.1} parent=0 // pred_check_branch
    %21 = sbr.rel (0) target = $region21
  $region20: #{_mlp_forward_impl.1} parent=0 // pred_region
    _
  $region21: #{_mlp_forward_impl.1} parent=0 // pred_fallthru
    _
  // Predicated region
  $region22: #{_mlp_forward_impl.1} parent=0 // pred_check
    _
  $region23: #{_mlp_forward_impl.1} parent=0 // pred_check_branch
    %23 = sbr.rel (0) target = $region25
  $region24: #{_mlp_forward_impl.1} parent=0 // pred_region
    _
  $region25: #{_mlp_forward_impl.1} parent=0 // pred_fallthru
    _
  // Predicated region
  $region26: #{_mlp_forward_impl.1} parent=0 // pred_check
    _
  $region27: #{_mlp_forward_impl.1} parent=0 // pred_check_branch
    %25 = sbr.rel (0) target = $region29
  $region28: #{_mlp_forward_impl.1} parent=0 // pred_region
    _
  $region29: #{_mlp_forward_impl.1} parent=0 // pred_fallthru
    _
  %v27 = vld [vmem:[%s0] sm:$0xff]
  %v28 = vld [vmem:[%s0 + $0x8] sm:$0xff]
  %v29 = vld [vmem:[%s0 + $0x10] sm:$0xff]
  %v30 = vld [vmem:[%s0 + $0x18] sm:$0xf]
  %v31 = vld [vmem:[%s0 + $0x1c] sm:$0xff]
  %v32 = vld [vmem:[%s0 + $0x24] sm:$0xff]
  %v33 = vld [vmem:[%s0 + $0x2c] sm:$0xff]
  %v34 = vld [vmem:[%s0 + $0x34] sm:$0xf]
  %v35 = vld [vmem:[%s1] sm:$0xf]
  %v36 = vld [vmem:[%s1 + $0x4] sm:$0xf]
  %v37 = vld [vmem:[%s1 + $0x8] sm:$0xf]
  %v38 = vld [vmem:[%s1 + $0xc] sm:$0xf]
  %v39 = vld [vmem:[%s1 + $0x10] sm:$0xf]
  %v40 = vld [vmem:[%s1 + $0x14] sm:$0xf]
  %v41 = vld [vmem:[%s1 + $0x18] sm:$0xf]
  %v42 = vld [vmem:[%s1 + $0x1c] sm:$0xf]
  %v43 = vld [vmem:[%s1 + $0x20] sm:$0xf]
  %v44 = vld [vmem:[%s1 + $0x24] sm:$0xf]
  %v45 = vld [vmem:[%s1 + $0x28] sm:$0xf]
  %v46 = vld [vmem:[%s1 + $0x2c] sm:$0xf]
  %v47 = vld [vmem:[%s1 + $0x30] sm:$0xf]
  %v48 = vld [vmem:[%s1 + $0x34] sm:$0xf]
  %v49 = vld [vmem:[%s1 + $0x38] sm:$0xf]
  %v50 = vld [vmem:[%s1 + $0x3c] sm:$0xf]
  %v51 = vld [vmem:[%s1 + $0x40] sm:$0xf]
  %v52 = vld [vmem:[%s1 + $0x44] sm:$0xf]
  %v53 = vld [vmem:[%s1 + $0x48] sm:$0xf]
  %v54 = vld [vmem:[%s1 + $0x4c] sm:$0xf]
  %v55 = vld [vmem:[%s1 + $0x50] sm:$0xf]
  %v56 = vld [vmem:[%s1 + $0x54] sm:$0xf]
  %v57 = vld [vmem:[%s1 + $0x58] sm:$0xf]
  %v58 = vld [vmem:[%s1 + $0x5c] sm:$0xf]
  %v59 = vld [vmem:[%s1 + $0x60] sm:$0xf]
  %v60 = vld [vmem:[%s1 + $0x64] sm:$0xf]
  %v61 = vld [vmem:[%s1 + $0x68] sm:$0xf]
  %v62 = vld [vmem:[%s1 + $0x6c] sm:$0xf]
  %v63 = vld [vmem:[%s1 + $0x70] sm:$0xf]
  %v64 = vld [vmem:[%s1 + $0x74] sm:$0xf]
  %v65 = vld [vmem:[%s1 + $0x78] sm:$0xf]
  %v66 = vld [vmem:[%s1 + $0x7c] sm:$0xf]
  %v67 = vld [vmem:[%s1 + $0x80] sm:$0xf]
  %v68 = vld [vmem:[%s1 + $0x84] sm:$0xf]
  %v69 = vld [vmem:[%s1 + $0x88] sm:$0xf]
  %v70 = vld [vmem:[%s1 + $0x8c] sm:$0xf]
  %v71 = vld [vmem:[%s1 + $0x90] sm:$0xf]
  %v72 = vld [vmem:[%s1 + $0x94] sm:$0xf]
  %v73 = vld [vmem:[%s1 + $0x98] sm:$0xf]
  %v74 = vld [vmem:[%s1 + $0x9c] sm:$0xf]
  %v75 = vld [vmem:[%s1 + $0xa0] sm:$0xf]
  %v76 = vld [vmem:[%s1 + $0xa4] sm:$0xf]
  %v77 = vld [vmem:[%s1 + $0xa8] sm:$0xf]
  %v78 = vld [vmem:[%s1 + $0xac] sm:$0xf]
  %v79 = vld [vmem:[%s1 + $0xb0] sm:$0xf]
  %v80 = vld [vmem:[%s1 + $0xb4] sm:$0xf]
  %v81 = vld [vmem:[%s1 + $0xb8] sm:$0xf]
  %v82 = vld [vmem:[%s1 + $0xbc] sm:$0xf]
  %v83 = vld [vmem:[%s1 + $0xc0] sm:$0xf]
  %v84 = vld [vmem:[%s1 + $0xc4] sm:$0xf]
  %v85 = vld [vmem:[%s1 + $0xc8] sm:$0xf]
  %v86 = vld [vmem:[%s1 + $0xcc] sm:$0xf]
  %v87 = vld [vmem:[%s1 + $0xd0] sm:$0xf]
  %v88 = vld [vmem:[%s1 + $0xd4] sm:$0xf]
  %v89 = vld [vmem:[%s1 + $0xd8] sm:$0xf]
  %v90 = vld [vmem:[%s1 + $0xdc] sm:$0xf]
  %v91 = vld [vmem:[%s1 + $0xe0] sm:$0xf]
  %v92 = vld [vmem:[%s1 + $0xe4] sm:$0xf]
  %v93 = vld [vmem:[%s1 + $0xe8] sm:$0xf]
  %v94 = vld [vmem:[%s1 + $0xec] sm:$0xf]
  %v95 = vld [vmem:[%s1 + $0xf0] sm:$0xf]
  %v96 = vld [vmem:[%s1 + $0xf4] sm:$0xf]
  %v97 = vld [vmem:[%s1 + $0xf8] sm:$0xf]
  %v98 = vld [vmem:[%s1 + $0xfc] sm:$0xf]
  %v99 = vld [vmem:[%s1 + $0x100] sm:$0xf]
  %v100 = vld [vmem:[%s1 + $0x104] sm:$0xf]
  %v101 = vld [vmem:[%s1 + $0x108] sm:$0xf]
  %v102 = vld [vmem:[%s1 + $0x10c] sm:$0xf]
  %v103 = vld [vmem:[%s1 + $0x110] sm:$0xf]
  %v104 = vld [vmem:[%s1 + $0x114] sm:$0xf]
  %v105 = vld [vmem:[%s1 + $0x118] sm:$0xf]
  %v106 = vld [vmem:[%s1 + $0x11c] sm:$0xf]
  %v107 = vld [vmem:[%s1 + $0x120] sm:$0xf]
  %v108 = vld [vmem:[%s1 + $0x124] sm:$0xf]
  %v109 = vld [vmem:[%s1 + $0x128] sm:$0xf]
  %v110 = vld [vmem:[%s1 + $0x12c] sm:$0xf]
  %v111 = vld [vmem:[%s1 + $0x130] sm:$0xf]
  %v112 = vld [vmem:[%s1 + $0x134] sm:$0xf]
  %v113 = vld [vmem:[%s1 + $0x138] sm:$0xf]
  %v114 = vld [vmem:[%s1 + $0x13c] sm:$0xf]
  %v115 = vld [vmem:[%s1 + $0x140] sm:$0xf]
  %v116 = vld [vmem:[%s1 + $0x144] sm:$0xf]
  %v117 = vld [vmem:[%s1 + $0x148] sm:$0xf]
  %v118 = vld [vmem:[%s1 + $0x14c] sm:$0xf]
  %v119 = vld [vmem:[%s1 + $0x150] sm:$0xf]
  %v120 = vld [vmem:[%s1 + $0x154] sm:$0xf]
  %v121 = vld [vmem:[%s1 + $0x158] sm:$0xf]
  %v122 = vld [vmem:[%s1 + $0x15c] sm:$0xf]
  %v123 = vld [vmem:[%s1 + $0x160] sm:$0xf]
  %v124 = vld [vmem:[%s1 + $0x164] sm:$0xf]
  %v125 = vld [vmem:[%s1 + $0x168] sm:$0xf]
  %v126 = vld [vmem:[%s1 + $0x16c] sm:$0xf]
  %v127 = vld [vmem:[%s1 + $0x170] sm:$0xf]
  %v128 = vld [vmem:[%s1 + $0x174] sm:$0xf]
  %v129 = vld [vmem:[%s1 + $0x178] sm:$0xf]
  %v130 = vld [vmem:[%s1 + $0x17c] sm:$0xf]
  %v131 = vld [vmem:[%s1 + $0x180] sm:$0xf]
  %v132 = vld [vmem:[%s1 + $0x184] sm:$0xf]
  %v133 = vld [vmem:[%s2] sm:$0x1]
  %v135 = vperm.slane %v133, 0
  %v145 = vunpack.c.l.b16 %v27
  %v146 = vunpack.c.h.b16 %v27
  %v147 = vunpack.c.l.b16 %v28
  %v148 = vunpack.c.h.b16 %v28
  %v149 = vunpack.c.l.b16 %v29
  %v150 = vunpack.c.h.b16 %v29
  %v151 = vunpack.c.l.b16 %v30
  %v152 = vunpack.c.l.b16 %v31
  %v153 = vunpack.c.h.b16 %v31
  %v154 = vunpack.c.l.b16 %v32
  %v155 = vunpack.c.h.b16 %v32
  %v156 = vunpack.c.l.b16 %v33
  %v157 = vunpack.c.h.b16 %v33
  %v158 = vunpack.c.l.b16 %v34
  %v159 = vpack.c.b16 %v152, %v145
  %v160 = vpack.c.b16 %v153, %v146
  %v161 = vpack.c.b16 %v154, %v147
  %v162 = vpack.c.b16 %v155, %v148
  %v163 = vpack.c.b16 %v156, %v149
  %v164 = vpack.c.b16 %v157, %v150
  %v165 = vpack.c.b16 %v158, %v151
  %v270 = vunpack.c.l.b16 %v35
  %v271 = vunpack.c.l.b16 %v36
  %v272 = vunpack.c.l.b16 %v37
  %v273 = vunpack.c.l.b16 %v38
  %v274 = vunpack.c.l.b16 %v39
  %v275 = vunpack.c.l.b16 %v40
  %v276 = vunpack.c.l.b16 %v41
  %v277 = vunpack.c.l.b16 %v42
  %v278 = vunpack.c.l.b16 %v43
  %v279 = vunpack.c.l.b16 %v44
  %v280 = vunpack.c.l.b16 %v45
  %v281 = vunpack.c.l.b16 %v46
  %v282 = vunpack.c.l.b16 %v47
  %v283 = vunpack.c.l.b16 %v48
  %v284 = vunpack.c.l.b16 %v49
  %v285 = vunpack.c.l.b16 %v50
  %v286 = vunpack.c.l.b16 %v51
  %v287 = vunpack.c.l.b16 %v52
  %v288 = vunpack.c.l.b16 %v53
  %v289 = vunpack.c.l.b16 %v54
  %v290 = vunpack.c.l.b16 %v55
  %v291 = vunpack.c.l.b16 %v56
  %v292 = vunpack.c.l.b16 %v57
  %v293 = vunpack.c.l.b16 %v58
  %v294 = vunpack.c.l.b16 %v59
  %v295 = vunpack.c.l.b16 %v60
  %v296 = vunpack.c.l.b16 %v61
  %v297 = vunpack.c.l.b16 %v62
  %v298 = vunpack.c.l.b16 %v63
  %v299 = vunpack.c.l.b16 %v64
  %v300 = vunpack.c.l.b16 %v65
  %v301 = vunpack.c.l.b16 %v66
  %v302 = vunpack.c.l.b16 %v67
  %v303 = vunpack.c.l.b16 %v68
  %v304 = vunpack.c.l.b16 %v69
  %v305 = vunpack.c.l.b16 %v70
  %v306 = vunpack.c.l.b16 %v71
  %v307 = vunpack.c.l.b16 %v72
  %v308 = vunpack.c.l.b16 %v73
  %v309 = vunpack.c.l.b16 %v74
  %v310 = vunpack.c.l.b16 %v75
  %v311 = vunpack.c.l.b16 %v76
  %v312 = vunpack.c.l.b16 %v77
  %v313 = vunpack.c.l.b16 %v78
  %v314 = vunpack.c.l.b16 %v79
  %v315 = vunpack.c.l.b16 %v80
  %v316 = vunpack.c.l.b16 %v81
  %v317 = vunpack.c.l.b16 %v82
  %v318 = vunpack.c.l.b16 %v83
  %v319 = vunpack.c.l.b16 %v84
  %v320 = vunpack.c.l.b16 %v85
  %v321 = vunpack.c.l.b16 %v86
  %v322 = vunpack.c.l.b16 %v87
  %v323 = vunpack.c.l.b16 %v88
  %v324 = vunpack.c.l.b16 %v89
  %v325 = vunpack.c.l.b16 %v90
  %v326 = vunpack.c.l.b16 %v91
  %v327 = vunpack.c.l.b16 %v92
  %v328 = vunpack.c.l.b16 %v93
  %v329 = vunpack.c.l.b16 %v94
  %v330 = vunpack.c.l.b16 %v95
  %v331 = vunpack.c.l.b16 %v96
  %v332 = vunpack.c.l.b16 %v97
  %v333 = vunpack.c.l.b16 %v98
  %v334 = vunpack.c.l.b16 %v99
  %v335 = vunpack.c.l.b16 %v100
  %v336 = vunpack.c.l.b16 %v101
  %v337 = vunpack.c.l.b16 %v102
  %v338 = vunpack.c.l.b16 %v103
  %v339 = vunpack.c.l.b16 %v104
  %v340 = vunpack.c.l.b16 %v105
  %v341 = vunpack.c.l.b16 %v106
  %v342 = vunpack.c.l.b16 %v107
  %v343 = vunpack.c.l.b16 %v108
  %v344 = vunpack.c.l.b16 %v109
  %v345 = vunpack.c.l.b16 %v110
  %v346 = vunpack.c.l.b16 %v111
  %v347 = vunpack.c.l.b16 %v112
  %v348 = vunpack.c.l.b16 %v113
  %v349 = vunpack.c.l.b16 %v114
  %v350 = vunpack.c.l.b16 %v115
  %v351 = vunpack.c.l.b16 %v116
  %v352 = vunpack.c.l.b16 %v117
  %v353 = vunpack.c.l.b16 %v118
  %v354 = vunpack.c.l.b16 %v119
  %v355 = vunpack.c.l.b16 %v120
  %v356 = vunpack.c.l.b16 %v121
  %v357 = vunpack.c.l.b16 %v122
  %v358 = vunpack.c.l.b16 %v123
  %v359 = vunpack.c.l.b16 %v124
  %v360 = vunpack.c.l.b16 %v125
  %v361 = vunpack.c.l.b16 %v126
  %v362 = vunpack.c.l.b16 %v127
  %v363 = vunpack.c.l.b16 %v128
  %v364 = vunpack.c.l.b16 %v129
  %v365 = vunpack.c.l.b16 %v130
  %v366 = vunpack.c.l.b16 %v131
  %v367 = vunpack.c.l.b16 %v132
  %v368 = vpack.c.b16 %v271, %v270
  %v369 = vpack.c.b16 %v273, %v272
  %v370 = vpack.c.b16 %v275, %v274
  %v371 = vpack.c.b16 %v277, %v276
  %v372 = vpack.c.b16 %v279, %v278
  %v373 = vpack.c.b16 %v281, %v280
  %v374 = vpack.c.b16 %v283, %v282
  %v375 = vpack.c.b16 %v285, %v284
  %v376 = vpack.c.b16 %v287, %v286
  %v377 = vpack.c.b16 %v289, %v288
  %v378 = vpack.c.b16 %v291, %v290
  %v379 = vpack.c.b16 %v293, %v292
  %v380 = vpack.c.b16 %v295, %v294
  %v381 = vpack.c.b16 %v297, %v296
  %v382 = vpack.c.b16 %v299, %v298
  %v383 = vpack.c.b16 %v301, %v300
  %v384 = vpack.c.b16 %v303, %v302
  %v385 = vpack.c.b16 %v305, %v304
  %v386 = vpack.c.b16 %v307, %v306
  %v387 = vpack.c.b16 %v309, %v308
  %v388 = vpack.c.b16 %v311, %v310
  %v389 = vpack.c.b16 %v313, %v312
  %v390 = vpack.c.b16 %v315, %v314
  %v391 = vpack.c.b16 %v317, %v316
  %v392 = vpack.c.b16 %v319, %v318
  %v393 = vpack.c.b16 %v321, %v320
  %v394 = vpack.c.b16 %v323, %v322
  %v395 = vpack.c.b16 %v325, %v324
  %v396 = vpack.c.b16 %v327, %v326
  %v397 = vpack.c.b16 %v329, %v328
  %v398 = vpack.c.b16 %v331, %v330
  %v399 = vpack.c.b16 %v333, %v332
  %v400 = vpack.c.b16 %v335, %v334
  %v401 = vpack.c.b16 %v337, %v336
  %v402 = vpack.c.b16 %v339, %v338
  %v403 = vpack.c.b16 %v341, %v340
  %v404 = vpack.c.b16 %v343, %v342
  %v405 = vpack.c.b16 %v345, %v344
  %v406 = vpack.c.b16 %v347, %v346
  %v407 = vpack.c.b16 %v349, %v348
  %v408 = vpack.c.b16 %v351, %v350
  %v409 = vpack.c.b16 %v353, %v352
  %v410 = vpack.c.b16 %v355, %v354
  %v411 = vpack.c.b16 %v357, %v356
  %v412 = vpack.c.b16 %v359, %v358
  %v413 = vpack.c.b16 %v361, %v360
  %v414 = vpack.c.b16 %v363, %v362
  %v415 = vpack.c.b16 %v365, %v364
  %v416 = vpack.c.b16 %v367, %v366
  %vm466 = vcmask 130048
  %v468 = vsel %vm466, %v165, 0
  %470 = vmatpush.bf16.msra.mxu0 %v375
  %471 = vmatpush.bf16.msra.mxu0 %v374
  %472 = vmatpush.bf16.msra.mxu0 %v373
  %473 = vmatpush.bf16.msra.mxu0 %v372
  %474 = vmatpush.bf16.msra.mxu0 %v371
  %475 = vmatpush.bf16.msra.mxu0 %v370
  %476 = vmatpush.bf16.msra.mxu0 %v369
  %477 = vmatpush.bf16.msra.mxu0 %v368
  %478 = vmatmul.bf16.gmra.mxu0 %v159
  %v479 = vpop.f32.mrf.mxu0
  %v480 = vadd.f32 %v135, %v479
  %v481 = vpop.f32.mrf.mxu0
  %v482 = vadd.f32 %v135, %v481
  %483 = vdwg.mxu0
  %484 = vmatpush.bf16.msra.mxu0 %v383
  %485 = vmatpush.bf16.msra.mxu0 %v382
  %486 = vmatpush.bf16.msra.mxu0 %v381
  %487 = vmatpush.bf16.msra.mxu0 %v380
  %488 = vmatpush.bf16.msra.mxu0 %v379
  %489 = vmatpush.bf16.msra.mxu0 %v378
  %490 = vmatpush.bf16.msra.mxu0 %v377
  %491 = vmatpush.bf16.msra.mxu0 %v376
  %492 = vmatmul.bf16.gmra.mxu0 %v160
  %v493 = vpop.f32.mrf.mxu0
  %v494 = vadd.f32 %v480, %v493
  %v495 = vpop.f32.mrf.mxu0
  %v496 = vadd.f32 %v482, %v495
  %497 = vdwg.mxu0
  %498 = vmatpush.bf16.msra.mxu0 %v391
  %499 = vmatpush.bf16.msra.mxu0 %v390
  %500 = vmatpush.bf16.msra.mxu0 %v389
  %501 = vmatpush.bf16.msra.mxu0 %v388
  %502 = vmatpush.bf16.msra.mxu0 %v387
  %503 = vmatpush.bf16.msra.mxu0 %v386
  %504 = vmatpush.bf16.msra.mxu0 %v385
  %505 = vmatpush.bf16.msra.mxu0 %v384
  %506 = vmatmul.bf16.gmra.mxu0 %v161
  %v507 = vpop.f32.mrf.mxu0
  %v508 = vadd.f32 %v494, %v507
  %v509 = vpop.f32.mrf.mxu0
  %v510 = vadd.f32 %v496, %v509
  %511 = vdwg.mxu0
  %512 = vmatpush.bf16.msra.mxu0 %v399
  %513 = vmatpush.bf16.msra.mxu0 %v398
  %514 = vmatpush.bf16.msra.mxu0 %v397
  %515 = vmatpush.bf16.msra.mxu0 %v396
  %516 = vmatpush.bf16.msra.mxu0 %v395
  %517 = vmatpush.bf16.msra.mxu0 %v394
  %518 = vmatpush.bf16.msra.mxu0 %v393
  %519 = vmatpush.bf16.msra.mxu0 %v392
  %520 = vmatmul.bf16.gmra.mxu0 %v162
  %v521 = vpop.f32.mrf.mxu0
  %v522 = vadd.f32 %v508, %v521
  %v523 = vpop.f32.mrf.mxu0
  %v524 = vadd.f32 %v510, %v523
  %525 = vdwg.mxu0
  %526 = vmatpush.bf16.msra.mxu0 %v407
  %527 = vmatpush.bf16.msra.mxu0 %v406
  %528 = vmatpush.bf16.msra.mxu0 %v405
  %529 = vmatpush.bf16.msra.mxu0 %v404
  %530 = vmatpush.bf16.msra.mxu0 %v403
  %531 = vmatpush.bf16.msra.mxu0 %v402
  %532 = vmatpush.bf16.msra.mxu0 %v401
  %533 = vmatpush.bf16.msra.mxu0 %v400
  %534 = vmatmul.bf16.gmra.mxu0 %v163
  %v535 = vpop.f32.mrf.mxu0
  %v536 = vadd.f32 %v522, %v535
  %v537 = vpop.f32.mrf.mxu0
  %v538 = vadd.f32 %v524, %v537
  %539 = vdwg.mxu0
  %540 = vmatpush.bf16.msra.mxu0 %v415
  %541 = vmatpush.bf16.msra.mxu0 %v414
  %542 = vmatpush.bf16.msra.mxu0 %v413
  %543 = vmatpush.bf16.msra.mxu0 %v412
  %544 = vmatpush.bf16.msra.mxu0 %v411
  %545 = vmatpush.bf16.msra.mxu0 %v410
  %546 = vmatpush.bf16.msra.mxu0 %v409
  %547 = vmatpush.bf16.msra.mxu0 %v408
  %548 = vmatmul.bf16.gmra.mxu0 %v164
  %v549 = vpop.f32.mrf.mxu0
  %v550 = vadd.f32 %v536, %v549
  %v551 = vpop.f32.mrf.mxu0
  %v552 = vadd.f32 %v538, %v551
  %553 = vdwg.mxu0
  %554 = vmatpush.bf16.msra.mxu0 0
  %555 = vmatpush.bf16.msra.mxu0 0
  %556 = vmatpush.bf16.msra.mxu0 0
  %557 = vmatpush.bf16.msra.mxu0 0
  %558 = vmatpush.bf16.msra.mxu0 0
  %559 = vmatpush.bf16.msra.mxu0 0
  %560 = vmatpush.bf16.msra.mxu0 0
  %561 = vmatpush.bf16.msra.mxu0 %v416
  %562 = vmatmul.bf16.gmra.mxu0 %v468
  %v563 = vpop.f32.mrf.mxu0
  %v564 = vadd.f32 %v550, %v563
  %v565 = vpop.f32.mrf.mxu0
  %v566 = vadd.f32 %v552, %v565
  %567 = vdwg.mxu0
  %v568 = vmax.f32 %v564, 0.0
  %v569 = vmax.f32 %v566, 0.0
  %v570 = vpack.c.bf16 %v569, %v568
  %v571 = vld [vmem:[%s3] sm:$0xf]
  %v572 = vld [vmem:[%s3 + $0x4] sm:$0xf]
  %v573 = vld [vmem:[%s3 + $0x8] sm:$0xf]
  %v574 = vld [vmem:[%s3 + $0xc] sm:$0xf]
  %v575 = vld [vmem:[%s3 + $0x10] sm:$0xf]
  %v576 = vld [vmem:[%s3 + $0x14] sm:$0xf]
  %v577 = vld [vmem:[%s3 + $0x18] sm:$0xf]
  %v578 = vld [vmem:[%s3 + $0x1c] sm:$0xf]
  %v579 = vld [vmem:[%s3 + $0x20] sm:$0xf]
  %v580 = vld [vmem:[%s3 + $0x24] sm:$0xf]
  %v581 = vld [vmem:[%s3 + $0x28] sm:$0xf]
  %v582 = vld [vmem:[%s3 + $0x2c] sm:$0xf]
  %v583 = vld [vmem:[%s3 + $0x30] sm:$0xf]
  %v584 = vld [vmem:[%s3 + $0x34] sm:$0xf]
  %v585 = vld [vmem:[%s3 + $0x38] sm:$0xf]
  %v586 = vld [vmem:[%s3 + $0x3c] sm:$0xf]
  %v587 = vld [vmem:[%s4] sm:$0x1]
  %v589 = vperm.slane %v587, 0
  %v607 = vunpack.c.l.b16 %v571
  %v608 = vunpack.c.l.b16 %v572
  %v609 = vunpack.c.l.b16 %v573
  %v610 = vunpack.c.l.b16 %v574
  %v611 = vunpack.c.l.b16 %v575
  %v612 = vunpack.c.l.b16 %v576
  %v613 = vunpack.c.l.b16 %v577
  %v614 = vunpack.c.l.b16 %v578
  %v615 = vunpack.c.l.b16 %v579
  %v616 = vunpack.c.l.b16 %v580
  %v617 = vunpack.c.l.b16 %v581
  %v618 = vunpack.c.l.b16 %v582
  %v619 = vunpack.c.l.b16 %v583
  %v620 = vunpack.c.l.b16 %v584
  %v621 = vunpack.c.l.b16 %v585
  %v622 = vunpack.c.l.b16 %v586
  %v623 = vpack.c.b16 %v608, %v607
  %v624 = vpack.c.b16 %v610, %v609
  %v625 = vpack.c.b16 %v612, %v611
  %v626 = vpack.c.b16 %v614, %v613
  %v627 = vpack.c.b16 %v616, %v615
  %v628 = vpack.c.b16 %v618, %v617
  %v629 = vpack.c.b16 %v620, %v619
  %v630 = vpack.c.b16 %v622, %v621
  %639 = vmatpush.bf16.msra.mxu0 %v630
  %640 = vmatpush.bf16.msra.mxu0 %v629
  %641 = vmatpush.bf16.msra.mxu0 %v628
  %642 = vmatpush.bf16.msra.mxu0 %v627
  %643 = vmatpush.bf16.msra.mxu0 %v626
  %644 = vmatpush.bf16.msra.mxu0 %v625
  %645 = vmatpush.bf16.msra.mxu0 %v624
  %646 = vmatpush.bf16.msra.mxu0 %v623
  %647 = vmatmul.bf16.gmra.mxu0 %v570
  %v648 = vpop.f32.mrf.mxu0
  %v649 = vadd.f32 %v589, %v648
  %v650 = vpop.f32.mrf.mxu0
  %v651 = vadd.f32 %v589, %v650
  %652 = vdwg.mxu0
  %v653 = vmax.f32 %v649, 0.0
  %v654 = vmax.f32 %v651, 0.0
  %v655 = vpack.c.bf16 %v654, %v653
  %v656 = vld [vmem:[%s5] sm:$0xf]
  %v657 = vld [vmem:[%s5 + $0x4] sm:$0xf]
  %v658 = vld [vmem:[%s5 + $0x8] sm:$0xf]
  %v659 = vld [vmem:[%s5 + $0xc] sm:$0xf]
  %v660 = vld [vmem:[%s5 + $0x10] sm:$0xf]
  %v661 = vld [vmem:[%s5 + $0x14] sm:$0xf]
  %v662 = vld [vmem:[%s5 + $0x18] sm:$0xf]
  %v663 = vld [vmem:[%s5 + $0x1c] sm:$0xf]
  %v664 = vld [vmem:[%s5 + $0x20] sm:$0xf]
  %v665 = vld [vmem:[%s5 + $0x24] sm:$0xf]
  %v666 = vld [vmem:[%s5 + $0x28] sm:$0xf]
  %v667 = vld [vmem:[%s5 + $0x2c] sm:$0xf]
  %v668 = vld [vmem:[%s5 + $0x30] sm:$0xf]
  %v669 = vld [vmem:[%s5 + $0x34] sm:$0xf]
  %v670 = vld [vmem:[%s5 + $0x38] sm:$0xf]
  %v671 = vld [vmem:[%s5 + $0x3c] sm:$0xf]
  %v672 = vld [vmem:[%s6] sm:$0x1]
  %v674 = vperm.slane %v672, 0
  %v692 = vunpack.c.l.b16 %v656
  %v693 = vunpack.c.l.b16 %v657
  %v694 = vunpack.c.l.b16 %v658
  %v695 = vunpack.c.l.b16 %v659
  %v696 = vunpack.c.l.b16 %v660
  %v697 = vunpack.c.l.b16 %v661
  %v698 = vunpack.c.l.b16 %v662
  %v699 = vunpack.c.l.b16 %v663
  %v700 = vunpack.c.l.b16 %v664
  %v701 = vunpack.c.l.b16 %v665
  %v702 = vunpack.c.l.b16 %v666
  %v703 = vunpack.c.l.b16 %v667
  %v704 = vunpack.c.l.b16 %v668
  %v705 = vunpack.c.l.b16 %v669
  %v706 = vunpack.c.l.b16 %v670
  %v707 = vunpack.c.l.b16 %v671
  %v708 = vpack.c.b16 %v693, %v692
  %v709 = vpack.c.b16 %v695, %v694
  %v710 = vpack.c.b16 %v697, %v696
  %v711 = vpack.c.b16 %v699, %v698
  %v712 = vpack.c.b16 %v701, %v700
  %v713 = vpack.c.b16 %v703, %v702
  %v714 = vpack.c.b16 %v705, %v704
  %v715 = vpack.c.b16 %v707, %v706
  %724 = vmatpush.bf16.msra.mxu0 %v715
  %725 = vmatpush.bf16.msra.mxu0 %v714
  %726 = vmatpush.bf16.msra.mxu0 %v713
  %727 = vmatpush.bf16.msra.mxu0 %v712
  %728 = vmatpush.bf16.msra.mxu0 %v711
  %729 = vmatpush.bf16.msra.mxu0 %v710
  %730 = vmatpush.bf16.msra.mxu0 %v709
  %731 = vmatpush.bf16.msra.mxu0 %v708
  %732 = vmatmul.bf16.gmra.mxu0 %v655
  %v733 = vpop.f32.mrf.mxu0
  %v734 = vadd.f32 %v674, %v733
  %v735 = vpop.f32.mrf.mxu0
  %v736 = vadd.f32 %v674, %v735
  %737 = vdwg.mxu0
  %738 = vmax.xlane.f32.xlu0 %v734
  %v739 = vpop.xlane.xlu0 %738
  %740 = vmax.xlane.f32.xlu0 %v736
  %v741 = vpop.xlane.xlu0 %740
  %v742 = vsub.f32 %v734, %v739
  %v743 = vsub.f32 %v736, %v741
  %v744 = vmul.f32 %v742, 1.442695
  %v745 = vpow.pop %v744
  %v746 = vmul.f32 %v743, 1.442695
  %v747 = vpow.pop %v746
  %748 = vadd.xlane.f32.xlu0 %v745
  %v749 = vpop.xlane.xlu0 %748
  %750 = vadd.xlane.f32.xlu0 %v747
  %v751 = vpop.xlane.xlu0 %750
  %v752 = vlog2.pop %v749
  %v753 = vmul.f32 %v752, 0.6931472
  %v754 = vlog2.pop %v751
  %v755 = vmul.f32 %v754, 0.6931472
  %v756 = vsub.f32 %v742, %v753
  %v757 = vsub.f32 %v743, %v755
  %758 = vst [vmem:[%s7] sm:$0xff] %v756
  %759 = vst [vmem:[%s7 + $0x8] sm:$0xff] %v757
  // Predicated region
  $region30: #{_mlp_forward_impl.1} parent=0 // pred_check
    _
  $region31: #{_mlp_forward_impl.1} parent=0 // pred_check_branch
    %761 = sbr.rel (0) target = $region33
  $region32: #{_mlp_forward_impl.1} parent=0 // pred_region
    _
  $region33: #{_mlp_forward_impl.1} parent=0 // pred_fallthru
    _
  // Predicated region
  $region34: #{_mlp_forward_impl.1} parent=0 // pred_check
    _
  $region35: #{_mlp_forward_impl.1} parent=0 // pred_check_branch
    %763 = sbr.rel (0) target = $region37
  $region36: #{_mlp_forward_impl.1} parent=0 // pred_region
    _
  $region37: #{_mlp_forward_impl.1} parent=0 // pred_fallthru
    _

</llo_original>
